<compile_context>
chip_gen: v5e
topology: v5e:2x2
jax: 0.10.0
libtpu: 0.0.40
codegen_flags: <defaults>
</compile_context>

<pallas_src>
import functools

import jax
import jax.numpy as jnp
from jax.experimental import pallas as pl
from jax.experimental.pallas import tpu as pltpu


def _round_up(x: int, m: int) -> int:
    return (x + m - 1) // m * m


# ----------------------------------------------------------------------------
# Fused kernel.
#   grid = (M/tm, I/tj); axis 1 (intermediate size) is the down-proj reduction.
#   Per step:  g = x_i @ Wg[:, j] + bg_j ; u = x_i @ Wu[:, j] + bu_j
#              h = SiLU(g) * u ;  acc += h @ Wd[j, :]
#   Last step: y_i = acc + bd
# ----------------------------------------------------------------------------
def _mlp_kernel(x_ref, wg_ref, wu_ref, wd_ref, bg_ref, bu_ref, bd_ref,
                y_ref, acc_ref):
    j = pl.program_id(1)

    @pl.when(j == 0)
    def _():
        acc_ref[...] = jnp.zeros_like(acc_ref)

    x = x_ref[...]
    g = jnp.dot(x, wg_ref[...], preferred_element_type=jnp.float32) + bg_ref[...]
    u = jnp.dot(x, wu_ref[...], preferred_element_type=jnp.float32) + bu_ref[...]
    h = (g * jax.nn.sigmoid(g) * u).astype(wd_ref.dtype)
    acc_ref[...] += jnp.dot(h, wd_ref[...], preferred_element_type=jnp.float32)

    @pl.when(j == pl.num_programs(1) - 1)
    def _():
        y_ref[...] = (acc_ref[...] + bd_ref[...]).astype(y_ref.dtype)


@functools.partial(jax.jit, static_argnames=("tm", "tj", "compute_dtype"))
def mlp_forward(x, params, *, tm=256, tj=512, compute_dtype=None):
    """x: (batch, seq, dim) -> (batch, seq, dim).

    compute_dtype: None (use x.dtype) or e.g. "bfloat16" for bf16 MXU matmuls
    with f32 accumulation.
    """
    B, S, D = x.shape
    out_dtype = x.dtype
    cdt = jnp.dtype(compute_dtype) if compute_dtype is not None else x.dtype

    M = B * S
    x2 = x.reshape(M, D).astype(cdt)
    wg_t = params["wg_t"].astype(cdt)
    wu_t = params["wu_t"].astype(cdt)
    wd_t = params["wd_t"].astype(cdt)
    # Keep biases in f32: they are added to the f32 matmul accumulators.
    bg = params["bg"].astype(jnp.float32)
    bu = params["bu"].astype(jnp.float32)
    bd = params["bd"].astype(jnp.float32)

    I = wg_t.shape[1]

    # --- tile selection: big tiles, capped by (aligned) problem size ---------
    # tm: sublane axis of x / y blocks -> multiple of 16 (safe for bf16 & f32).
    # tj: lane axis of Wg/Wu blocks & sublane axis of Wd block -> multiple of 128.
    tm_eff = min(tm, _round_up(M, 16))
    tj_eff = min(tj, _round_up(I, 128))

    Mp = _round_up(M, tm_eff)
    Ip = _round_up(I, tj_eff)
    Dp = _round_up(D, 128)   # full feature dim stays resident (lane-dense out)

    # --- zero padding: padded rows/cols contribute nothing -------------------
    if Mp != M or Dp != D:
        x2 = jnp.pad(x2, ((0, Mp - M), (0, Dp - D)))
    if Dp != D or Ip != I:
        wg_t = jnp.pad(wg_t, ((0, Dp - D), (0, Ip - I)))
        wu_t = jnp.pad(wu_t, ((0, Dp - D), (0, Ip - I)))
        wd_t = jnp.pad(wd_t, ((0, Ip - I), (0, Dp - D)))
    if Ip != I:
        bg = jnp.pad(bg, ((0, 0), (0, Ip - I)))
        bu = jnp.pad(bu, ((0, 0), (0, Ip - I)))
    if Dp != D:
        bd = jnp.pad(bd, ((0, 0), (0, Dp - D)))

    grid = (Mp // tm_eff, Ip // tj_eff)

    y = pl.pallas_call(
        _mlp_kernel,
        out_shape=jax.ShapeDtypeStruct((Mp, Dp), out_dtype),
        grid_spec=pltpu.PrefetchScalarGridSpec(
            num_scalar_prefetch=0,
            grid=grid,
            in_specs=[
                pl.BlockSpec((tm_eff, Dp), lambda i, j: (i, 0)),    # x (resident over j)
                pl.BlockSpec((Dp, tj_eff), lambda i, j: (0, j)),    # Wg^T slice
                pl.BlockSpec((Dp, tj_eff), lambda i, j: (0, j)),    # Wu^T slice
                pl.BlockSpec((tj_eff, Dp), lambda i, j: (j, 0)),    # Wd^T slice
                pl.BlockSpec((1, tj_eff), lambda i, j: (0, j)),     # bg slice
                pl.BlockSpec((1, tj_eff), lambda i, j: (0, j)),     # bu slice
                pl.BlockSpec((1, Dp), lambda i, j: (0, 0)),         # bd (full)
            ],
            out_specs=pl.BlockSpec((tm_eff, Dp), lambda i, j: (i, 0)),
            scratch_shapes=[pltpu.VMEM((tm_eff, Dp), jnp.float32)],
        ),
        compiler_params=pltpu.CompilerParams(
            # axis 0 (row blocks) is independent -> megacore sharding on v7x
            # (at real shapes M // tm >= 2); axis 1 is the down-proj reduction.
            dimension_semantics=("parallel", "arbitrary"),
            vmem_limit_bytes=64 * 1024 * 1024,
        ),
    )(x2, wg_t, wu_t, wd_t, bg, bu, bd)

    return y[:M, :D].reshape(B, S, D)


def init_params(key, dim, intermediate_size, dtype=jnp.float32):
    """Deterministic init mirroring nn.Linear shapes (weights stored [in, out])."""
    ks = jax.random.split(key, 6)
    scale_d = 1.0 / jnp.sqrt(dim)
    scale_i = 1.0 / jnp.sqrt(intermediate_size)
    return {
        # gate / up: nn.Linear(dim, intermediate_size) -> W [I, D]; stored transposed.
        "wg_t": jax.random.uniform(ks[0], (dim, intermediate_size), dtype,
                                   -scale_d, scale_d),
        "bg":   jax.random.uniform(ks[1], (1, intermediate_size), dtype,
                                   -scale_d, scale_d),
        "wu_t": jax.random.uniform(ks[2], (dim, intermediate_size), dtype,
                                   -scale_d, scale_d),
        "bu":   jax.random.uniform(ks[3], (1, intermediate_size), dtype,
                                   -scale_d, scale_d),
        # down: nn.Linear(intermediate_size, dim) -> W [D, I]; stored transposed.
        "wd_t": jax.random.uniform(ks[4], (intermediate_size, dim), dtype,
                                   -scale_i, scale_i),
        "bd":   jax.random.uniform(ks[5], (1, dim), dtype, -scale_i, scale_i),
    }


def mlp_reference(x, params):
    B, S, D = x.shape
    x2 = x.reshape(B * S, D)
    g = x2 @ params["wg_t"] + params["bg"]
    u = x2 @ params["wu_t"] + params["bu"]
    h = jax.nn.silu(g) * u
    y = h @ params["wd_t"] + params["bd"]
    return y.reshape(B, S, D)


if __name__ == "__main__":
    # Small shapes consistent with ModelArgs (dim / intermediate_size scaled down).
    batch, seq = 2, 8
    dim, intermediate_size = 256, 512

    key = jax.random.PRNGKey(0)
    kx, kp = jax.random.split(key)
    x = jax.random.normal(kx, (batch, seq, dim), jnp.float32)
    params = init_params(kp, dim, intermediate_size)

    ref = mlp_reference(x, params)

    # f32 path (strict correctness check).
    out = jax.block_until_ready(mlp_forward(x, params))
    assert out.shape == (batch, seq, dim)
    assert jnp.allclose(out, ref, atol=2e-4, rtol=2e-4), "f32 mismatch vs reference"

    # bf16 MXU path (f32 accumulation) -- looser tolerance for bf16 rounding.
    out_bf16 = jax.block_until_ready(mlp_forward(x, params, compute_dtype="bfloat16"))
    assert out_bf16.shape == (batch, seq, dim)
    assert jnp.allclose(out_bf16, ref, atol=5e-2, rtol=5e-2), "bf16 mismatch vs reference"

    print("KERNEL_OK")
</pallas_src>

<mosaic_0001>
module attributes {stable_mosaic.version = 11 : i64} {
  func.func @_mlp_kernel(%arg0: i32, %arg1: i32, %arg2: memref<16x256xf32, #tpu.memory_space<vmem>>, %arg3: memref<256x512xf32, #tpu.memory_space<vmem>>, %arg4: memref<256x512xf32, #tpu.memory_space<vmem>>, %arg5: memref<512x256xf32, #tpu.memory_space<vmem>>, %arg6: memref<1x512xf32, #tpu.memory_space<vmem>>, %arg7: memref<1x512xf32, #tpu.memory_space<vmem>>, %arg8: memref<1x256xf32, #tpu.memory_space<vmem>>, %arg9: memref<16x256xf32, #tpu.memory_space<vmem>>, %arg10: memref<16x256xf32, #tpu.memory_space<vmem>>) attributes {dimension_semantics = [#tpu.dimension_semantics<parallel>, #tpu.dimension_semantics<arbitrary>], iteration_bounds = array<i64: 1, 1>, scalar_prefetch = 0 : i64, scratch_operands = 1 : i64, tpu.core_type = #tpu.core_type<tc>, window_params = [{transform_indices = @transform_0, window_bounds = array<i64: 16, 256>}, {transform_indices = @transform_1, window_bounds = array<i64: 256, 512>}, {transform_indices = @transform_2, window_bounds = array<i64: 256, 512>}, {transform_indices = @transform_3, window_bounds = array<i64: 512, 256>}, {transform_indices = @transform_4, window_bounds = array<i64: 1, 512>}, {transform_indices = @transform_5, window_bounds = array<i64: 1, 512>}, {pipeline_mode = #tpu.pipeline_mode<synchronous>, transform_indices = @transform_6, window_bounds = array<i64: 1, 256>}, {transform_indices = @transform_7, window_bounds = array<i64: 16, 256>}]} {
    %c0_i32 = arith.constant 0 : i32
    %0 = arith.cmpi eq, %arg1, %c0_i32 : i32
    %1 = arith.extui %0 : i1 to i32
    %c0_i32_0 = arith.constant 0 : i32
    %2 = arith.cmpi ne, %1, %c0_i32_0 : i32
    scf.if %2 {
      %cst_21 = arith.constant 0.000000e+00 : f32
      %29 = vector.broadcast %cst_21 : f32 to vector<16x256xf32>
      %c0_22 = arith.constant 0 : index
      %c0_23 = arith.constant 0 : index
      %30 = vector.load %arg10[%c0_22, %c0_23] : memref<16x256xf32, #tpu.memory_space<vmem>>, vector<16x256xf32>
      tpu.vector_store %arg10[%c0_22, %c0_23], %29 {strides = array<i32>} : memref<16x256xf32, #tpu.memory_space<vmem>>, vector<16x256xf32>,
    } else {
    }
    %c0 = arith.constant 0 : index
    %c0_1 = arith.constant 0 : index
    %3 = vector.load %arg2[%c0, %c0_1] : memref<16x256xf32, #tpu.memory_space<vmem>>, vector<16x256xf32>
    %c0_2 = arith.constant 0 : index
    %c0_3 = arith.constant 0 : index
    %4 = vector.load %arg3[%c0_2, %c0_3] : memref<256x512xf32, #tpu.memory_space<vmem>>, vector<256x512xf32>
    %cst = arith.constant dense<0.000000e+00> : vector<16x512xf32>
    %5 = tpu.matmul %3, %4, %cst {dimension_numbers = #tpu.dot_dimension_numbers<[1], [0], [0], [1], [0, 0, 1, 1], [], []>} : vector<16x256xf32>, vector<256x512xf32>, vector<16x512xf32> -> vector<16x512xf32>
    %c0_4 = arith.constant 0 : index
    %c0_5 = arith.constant 0 : index
    %6 = vector.load %arg6[%c0_4, %c0_5] : memref<1x512xf32, #tpu.memory_space<vmem>>, vector<1x512xf32>
    %7 = vector.broadcast %6 : vector<1x512xf32> to vector<16x512xf32>
    %8 = arith.addf %5, %7 : vector<16x512xf32>
    %c0_6 = arith.constant 0 : index
    %c0_7 = arith.constant 0 : index
    %9 = vector.load %arg4[%c0_6, %c0_7] : memref<256x512xf32, #tpu.memory_space<vmem>>, vector<256x512xf32>
    %cst_8 = arith.constant dense<0.000000e+00> : vector<16x512xf32>
    %10 = tpu.matmul %3, %9, %cst_8 {dimension_numbers = #tpu.dot_dimension_numbers<[1], [0], [0], [1], [0, 0, 1, 1], [], []>} : vector<16x256xf32>, vector<256x512xf32>, vector<16x512xf32> -> vector<16x512xf32>
    %c0_9 = arith.constant 0 : index
    %c0_10 = arith.constant 0 : index
    %11 = vector.load %arg7[%c0_9, %c0_10] : memref<1x512xf32, #tpu.memory_space<vmem>>, vector<1x512xf32>
    %12 = vector.broadcast %11 : vector<1x512xf32> to vector<16x512xf32>
    %13 = arith.addf %10, %12 : vector<16x512xf32>
    %14 = arith.negf %8 : vector<16x512xf32>
    %15 = math.exp %14 : vector<16x512xf32>
    %cst_11 = arith.constant 1.000000e+00 : f32
    %16 = vector.broadcast %cst_11 : f32 to vector<16x512xf32>
    %17 = arith.addf %16, %15 : vector<16x512xf32>
    %18 = arith.divf %16, %17 : vector<16x512xf32>
    %19 = arith.mulf %8, %18 : vector<16x512xf32>
    %20 = arith.mulf %19, %13 : vector<16x512xf32>
    %c0_12 = arith.constant 0 : index
    %c0_13 = arith.constant 0 : index
    %21 = vector.load %arg10[%c0_12, %c0_13] : memref<16x256xf32, #tpu.memory_space<vmem>>, vector<16x256xf32>
    %c0_14 = arith.constant 0 : index
    %c0_15 = arith.constant 0 : index
    %22 = vector.load %arg5[%c0_14, %c0_15] : memref<512x256xf32, #tpu.memory_space<vmem>>, vector<512x256xf32>
    %cst_16 = arith.constant dense<0.000000e+00> : vector<16x256xf32>
    %23 = tpu.matmul %20, %22, %cst_16 {dimension_numbers = #tpu.dot_dimension_numbers<[1], [0], [0], [1], [0, 0, 1, 1], [], []>} : vector<16x512xf32>, vector<512x256xf32>, vector<16x256xf32> -> vector<16x256xf32>
    %24 = arith.addf %21, %23 : vector<16x256xf32>
    %c0_17 = arith.constant 0 : index
    %c0_18 = arith.constant 0 : index
    %25 = vector.load %arg10[%c0_17, %c0_18] : memref<16x256xf32, #tpu.memory_space<vmem>>, vector<16x256xf32>
    tpu.vector_store %arg10[%c0_17, %c0_18], %24 {strides = array<i32>} : memref<16x256xf32, #tpu.memory_space<vmem>>, vector<16x256xf32>,
    %c0_i32_19 = arith.constant 0 : i32
    %26 = arith.cmpi eq, %arg1, %c0_i32_19 : i32
    %27 = arith.extui %26 : i1 to i32
    %c0_i32_20 = arith.constant 0 : i32
    %28 = arith.cmpi ne, %27, %c0_i32_20 : i32
    scf.if %28 {
      %c0_21 = arith.constant 0 : index
      %c0_22 = arith.constant 0 : index
      %29 = vector.load %arg10[%c0_21, %c0_22] : memref<16x256xf32, #tpu.memory_space<vmem>>, vector<16x256xf32>
      %c0_23 = arith.constant 0 : index
      %c0_24 = arith.constant 0 : index
      %30 = vector.load %arg8[%c0_23, %c0_24] : memref<1x256xf32, #tpu.memory_space<vmem>>, vector<1x256xf32>
      %31 = vector.broadcast %30 : vector<1x256xf32> to vector<16x256xf32>
      %32 = arith.addf %29, %31 : vector<16x256xf32>
      %c0_25 = arith.constant 0 : index
      %c0_26 = arith.constant 0 : index
      %33 = vector.load %arg9[%c0_25, %c0_26] : memref<16x256xf32, #tpu.memory_space<vmem>>, vector<16x256xf32>
      tpu.vector_store %arg9[%c0_25, %c0_26], %32 {strides = array<i32>} : memref<16x256xf32, #tpu.memory_space<vmem>>, vector<16x256xf32>,
    } else {
    }
    return
  }
  func.func @transform_0(%arg0: i32, %arg1: i32) -> (i32, i32) {
    %c0_i32 = arith.constant 0 : i32
    %c0_i32_0 = arith.constant 0 : i32
    return %arg0, %c0_i32 : i32, i32
  }
  func.func @transform_1(%arg0: i32, %arg1: i32) -> (i32, i32) {
    %c0_i32 = arith.constant 0 : i32
    %c0_i32_0 = arith.constant 0 : i32
    return %c0_i32, %arg1 : i32, i32
  }
  func.func @transform_2(%arg0: i32, %arg1: i32) -> (i32, i32) {
    %c0_i32 = arith.constant 0 : i32
    %c0_i32_0 = arith.constant 0 : i32
    return %c0_i32, %arg1 : i32, i32
  }
  func.func @transform_3(%arg0: i32, %arg1: i32) -> (i32, i32) {
    %c0_i32 = arith.constant 0 : i32
    %c0_i32_0 = arith.constant 0 : i32
    return %arg1, %c0_i32 : i32, i32
  }
  func.func @transform_4(%arg0: i32, %arg1: i32) -> (i32, i32) {
    %c0_i32 = arith.constant 0 : i32
    %c0_i32_0 = arith.constant 0 : i32
    return %c0_i32, %arg1 : i32, i32
  }
  func.func @transform_5(%arg0: i32, %arg1: i32) -> (i32, i32) {
    %c0_i32 = arith.constant 0 : i32
    %c0_i32_0 = arith.constant 0 : i32
    return %c0_i32, %arg1 : i32, i32
  }
  func.func @transform_6(%arg0: i32, %arg1: i32) -> (i32, i32) {
    %c0_i32 = arith.constant 0 : i32
    %c0_i32_0 = arith.constant 0 : i32
    %c0_i32_1 = arith.constant 0 : i32
    return %c0_i32, %c0_i32_0 : i32, i32
  }
  func.func @transform_7(%arg0: i32, %arg1: i32) -> (i32, i32) {
    %c0_i32 = arith.constant 0 : i32
    %c0_i32_0 = arith.constant 0 : i32
    return %arg0, %c0_i32 : i32, i32
  }
}

</mosaic_0001>

<llo_original>
// kernel: mlp_forward.1
$region0: #{mlp_forward.1}
  #allocation0 [shape = 'u32[]', space=smem, size = 0x4, offset = 0x4, fixed_abs, tag = 'smem constant byte address 0x4 - core index']
  #allocation1 [shape = 'u32[72,128]{1,0:T(1,128)}', space=vmem, size = 0x9000, scoped, tag = 'internal scratch']
  #allocation2 [shape = 'f32[16,256]{1,0:T(8,128)}', space=vmem, size = 0x4000, scoped, tag = 'scratch operand']
  %s0 = inlined_call_operand.hbm [shape: f32[16,256], index: 0, kind: input, shape index: {}]
  %s1 = inlined_call_operand.hbm [shape: f32[256,512], index: 1, kind: input, shape index: {}]
  %s2 = inlined_call_operand.hbm [shape: f32[256,512], index: 2, kind: input, shape index: {}]
  %s3 = inlined_call_operand.hbm [shape: f32[512,256], index: 3, kind: input, shape index: {}]
  %s4 = inlined_call_operand.hbm [shape: f32[1,512], index: 4, kind: input, shape index: {}]
  %s5 = inlined_call_operand.hbm [shape: f32[1,512], index: 5, kind: input, shape index: {}]
  %s6 = inlined_call_operand.hbm [shape: f32[1,256], index: 6, kind: input, shape index: {}]
  %s7 = inlined_call_operand.hbm [shape: f32[16,256], index: 7, kind: output, shape index: {}]
  %s8 = sld [smem:[#allocation0]]
  $region74: #{mlp_forward.1} parent=0
    _
  %s10 = ssub.s32 1, %s8
  %s11 = scalar_select 0, %s10, %s8
  $region1: #{mlp_forward.1} parent=0
    #allocation3 [shape = 'u8[16384]{0}', space=vmem, size = 0x4000, scoped, tag = 'input window, operand 0, single buffered']
    #allocation4 [shape = 's32[1]{0}', space=sflag, size = 0x4, scoped, tag = 'scoped memory for mlp_forward.1']
    #allocation5 [shape = 's32[1]{0}', space=sflag, size = 0x4, scoped, tag = 'scoped memory for mlp_forward.1']
    #allocation6 [shape = 'u8[524288]{0}', space=vmem, size = 0x80000, scoped, tag = 'input window, operand 1, single buffered']
    #allocation7 [shape = 's32[1]{0}', space=sflag, size = 0x4, scoped, tag = 'scoped memory for mlp_forward.1']
    #allocation8 [shape = 'u8[524288]{0}', space=vmem, size = 0x80000, scoped, tag = 'input window, operand 2, single buffered']
    #allocation9 [shape = 'u8[524288]{0}', space=vmem, size = 0x80000, scoped, tag = 'input window, operand 3, single buffered']
    #allocation10 [shape = 's32[1]{0}', space=sflag, size = 0x4, scoped, tag = 'scoped memory for mlp_forward.1']
    #allocation11 [shape = 'u8[2048]{0}', space=vmem, size = 0x800, scoped, tag = 'input window, operand 4, single buffered']
    #allocation12 [shape = 'u8[2048]{0}', space=vmem, size = 0x800, scoped, tag = 'input window, operand 5, single buffered']
    #allocation13 [shape = 's32[1]{0}', space=sflag, size = 0x4, scoped, tag = 'scoped memory for mlp_forward.1']
    #allocation14 [shape = 'u8[1024]{0}', space=vmem, size = 0x400, scoped, tag = 'input window, operand 6, single buffered']
    #allocation15 [shape = 'u8[16384]{0}', space=vmem, size = 0x4000, scoped, tag = 'output window, operand 0, single buffered']
    %12 = vsyncpa [#allocation4], 0
    %13 = vsyncpa [#allocation7], 0
    %14 = vsyncpa [#allocation10], 0
    %15 = vsyncpa [#allocation13], 0
    %16 = vsyncpa [#allocation5], 0
    // Predicated region
    $region2: #{mlp_forward.1} parent=1 // pred_check
      _
    $region3: #{mlp_forward.1} parent=1 // pred_check_branch
      %18 = sbr.rel (0) target = $region5
    $region4: #{mlp_forward.1} parent=1 // pred_region
      %20 = vsyncadd [#allocation4], 0
      %s21 = sshll.u32 %s0, 4
      %s22 = int_to_ptr.hbm [resolvable:$true] %s21
      %s23 = sshll.u32 [#allocation3], 4
      %s24 = int_to_ptr.vmem [resolvable:$true] %s23
      %29 = dma.hbm_to_vmem [thread:$0]  %s22, 512, %s24, [#allocation4], 256, 256, 16
    $region5: #{mlp_forward.1} parent=1 // pred_fallthru
      _
    // Predicated region
    $region6: #{mlp_forward.1} parent=1 // pred_check
      _
    $region7: #{mlp_forward.1} parent=1 // pred_check_branch
      %31 = sbr.rel (0) target = $region9
    $region8: #{mlp_forward.1} parent=1 // pred_region
      %33 = vsyncadd [#allocation7], 0
      %s34 = sshll.u32 %s1, 4
      %s35 = int_to_ptr.hbm [resolvable:$true] %s34
      %s36 = sshll.u32 [#allocation6], 4
      %s37 = int_to_ptr.vmem [resolvable:$true] %s36
      %42 = dma.hbm_to_vmem [thread:$0]  %s35, 16384, %s37, [#allocation7], 512, 512, 32
    $region9: #{mlp_forward.1} parent=1 // pred_fallthru
      _
    // Predicated region
    $region10: #{mlp_forward.1} parent=1 // pred_check
      _
    $region11: #{mlp_forward.1} parent=1 // pred_check_branch
      %44 = sbr.rel (0) target = $region13
    $region12: #{mlp_forward.1} parent=1 // pred_region
      %46 = vsyncadd [#allocation7], 0
      %s47 = sshll.u32 %s2, 4
      %s48 = int_to_ptr.hbm [resolvable:$true] %s47
      %s49 = sshll.u32 [#allocation8], 4
      %s50 = int_to_ptr.vmem [resolvable:$true] %s49
      %55 = dma.hbm_to_vmem [thread:$0]  %s48, 16384, %s50, [#allocation7], 512, 512, 32
    $region13: #{mlp_forward.1} parent=1 // pred_fallthru
      _
    // Predicated region
    $region14: #{mlp_forward.1} parent=1 // pred_check
      _
    $region15: #{mlp_forward.1} parent=1 // pred_check_branch
      %57 = sbr.rel (0) target = $region17
    $region16: #{mlp_forward.1} parent=1 // pred_region
      %59 = vsyncadd [#allocation10], 0
      %s60 = sshll.u32 %s3, 4
      %s61 = int_to_ptr.hbm [resolvable:$true] %s60
      %s62 = sshll.u32 [#allocation9], 4
      %s63 = int_to_ptr.vmem [resolvable:$true] %s62
      %68 = dma.hbm_to_vmem [thread:$0]  %s61, 16384, %s63, [#allocation10], 256, 256, 16
    $region17: #{mlp_forward.1} parent=1 // pred_fallthru
      _
    // Predicated region
    $region18: #{mlp_forward.1} parent=1 // pred_check
      _
    $region19: #{mlp_forward.1} parent=1 // pred_check_branch
      %70 = sbr.rel (0) target = $region21
    $region20: #{mlp_forward.1} parent=1 // pred_region
      %72 = vsyncadd [#allocation10], 0
      %s74 = sshll.u32 %s4, 4
      %s75 = int_to_ptr.hbm [resolvable:$true] %s74
      %s76 = sshll.u32 [#allocation11], 4
      %s77 = int_to_ptr.vmem [resolvable:$true] %s76
      %79 = dma.hbm_to_vmem [thread:$0]  %s75, 64, %s77, [#allocation10]
    $region21: #{mlp_forward.1} parent=1 // pred_fallthru
      _
    // Predicated region
    $region22: #{mlp_forward.1} parent=1 // pred_check
      _
    $region23: #{mlp_forward.1} parent=1 // pred_check_branch
      %81 = sbr.rel (0) target = $region25
    $region24: #{mlp_forward.1} parent=1 // pred_region
      %83 = vsyncadd [#allocation13], 0
      %s85 = sshll.u32 %s5, 4
      %s86 = int_to_ptr.hbm [resolvable:$true] %s85
      %s87 = sshll.u32 [#allocation12], 4
      %s88 = int_to_ptr.vmem [resolvable:$true] %s87
      %90 = dma.hbm_to_vmem [thread:$0]  %s86, 64, %s88, [#allocation13]
    $region25: #{mlp_forward.1} parent=1 // pred_fallthru
      _
    // Predicated region
    $region26: #{mlp_forward.1} parent=1 // pred_check
      _
    $region27: #{mlp_forward.1} parent=1 // pred_check_branch
      %92 = sbr.rel (0) target = $region29
    $region28: #{mlp_forward.1} parent=1 // pred_region
      %94 = vsyncadd [#allocation13], 0
      %s96 = sshll.u32 %s6, 4
      %s97 = int_to_ptr.hbm [resolvable:$true] %s96
      %s98 = sshll.u32 [#allocation14], 4
      %s99 = int_to_ptr.vmem [resolvable:$true] %s98
      %101 = dma.hbm_to_vmem [thread:$0]  %s97, 32, %s99, [#allocation13]
    $region29: #{mlp_forward.1} parent=1 // pred_fallthru
      _
    // Predicated region
    $region30: #{mlp_forward.1} parent=1 // pred_check
      _
    $region31: #{mlp_forward.1} parent=1 // pred_check_branch
      %103 = sbr.rel (0) target = $region33
    $region32: #{mlp_forward.1} parent=1 // pred_region
      %105 = dma.done [#allocation4], 512
    $region33: #{mlp_forward.1} parent=1 // pred_fallthru
      _
    // Predicated region
    $region34: #{mlp_forward.1} parent=1 // pred_check
      _
    $region35: #{mlp_forward.1} parent=1 // pred_check_branch
      %107 = sbr.rel (0) target = $region37
    $region36: #{mlp_forward.1} parent=1 // pred_region
      %109 = dma.done [#allocation7], 16384
    $region37: #{mlp_forward.1} parent=1 // pred_fallthru
      _
    // Predicated region
    $region38: #{mlp_forward.1} parent=1 // pred_check
      _
    $region39: #{mlp_forward.1} parent=1 // pred_check_branch
      %111 = sbr.rel (0) target = $region41
    $region40: #{mlp_forward.1} parent=1 // pred_region
      %113 = dma.done [#allocation7], 16384
    $region41: #{mlp_forward.1} parent=1 // pred_fallthru
      _
    // Predicated region
    $region42: #{mlp_forward.1} parent=1 // pred_check
      _
    $region43: #{mlp_forward.1} parent=1 // pred_check_branch
      %115 = sbr.rel (0) target = $region45
    $region44: #{mlp_forward.1} parent=1 // pred_region
      %117 = dma.done [#allocation10], 16384
    $region45: #{mlp_forward.1} parent=1 // pred_fallthru
      _
    // Predicated region
    $region46: #{mlp_forward.1} parent=1 // pred_check
      _
    $region47: #{mlp_forward.1} parent=1 // pred_check_branch
      %119 = sbr.rel (0) target = $region49
    $region48: #{mlp_forward.1} parent=1 // pred_region
      %121 = dma.done [#allocation10], 64
    $region49: #{mlp_forward.1} parent=1 // pred_fallthru
      _
    // Predicated region
    $region50: #{mlp_forward.1} parent=1 // pred_check
      _
    $region51: #{mlp_forward.1} parent=1 // pred_check_branch
      %123 = sbr.rel (0) target = $region53
    $region52: #{mlp_forward.1} parent=1 // pred_region
      %125 = dma.done [#allocation13], 64
    $region53: #{mlp_forward.1} parent=1 // pred_fallthru
      _
    // Predicated region
    $region54: #{mlp_forward.1} parent=1 // pred_check
      _
    $region55: #{mlp_forward.1} parent=1 // pred_check_branch
      %127 = sbr.rel (0) target = $region57
    $region56: #{mlp_forward.1} parent=1 // pred_region
      %129 = dma.done [#allocation13], 32
    $region57: #{mlp_forward.1} parent=1 // pred_fallthru
      _
    %p130 = scmp.eq.s32.totalorder 0, 0
    // Predicated region
    $region58: #{mlp_forward.1} parent=1 // pred_check
      %p131 = pneg %p130
    $region59: #{mlp_forward.1} parent=1 // pred_check_branch
      %133 = sbr.rel (%p131) target = $region61
    $region60: #{mlp_forward.1} parent=1 // pred_region
      %134 = vst [vmem:[#allocation2] sm:$0xff] 0.0
      %135 = vst [vmem:[#allocation2 + $0x8] sm:$0xff] 0.0
      %136 = vst [vmem:[#allocation2 + $0x10] sm:$0xff] 0.0
      %137 = vst [vmem:[#allocation2 + $0x18] sm:$0xff] 0.0
    $region61: #{mlp_forward.1} parent=1 // pred_fallthru
      _
    %v138 = vld [vmem:[#allocation3] sm:$0xff]
    %v139 = vld [vmem:[#allocation3 + $0x8] sm:$0xff]
    %v140 = vld [vmem:[#allocation3 + $0x10] sm:$0xff]
    %v141 = vld [vmem:[#allocation3 + $0x18] sm:$0xff]
    %v142 = vld [vmem:[#allocation6] sm:$0xff]
    %v143 = vld [vmem:[#allocation6 + $0x8] sm:$0xff]
    %v144 = vld [vmem:[#allocation6 + $0x10] sm:$0xff]
    %v145 = vld [vmem:[#allocation6 + $0x18] sm:$0xff]
    %v146 = vld [vmem:[#allocation6 + $0x20] sm:$0xff]
    %v147 = vld [vmem:[#allocation6 + $0x28] sm:$0xff]
    %v148 = vld [vmem:[#allocation6 + $0x30] sm:$0xff]
    %v149 = vld [vmem:[#allocation6 + $0x38] sm:$0xff]
    %v150 = vld [vmem:[#allocation6 + $0x40] sm:$0xff]
    %v151 = vld [vmem:[#allocation6 + $0x48] sm:$0xff]
    %v152 = vld [vmem:[#allocation6 + $0x50] sm:$0xff]
    %v153 = vld [vmem:[#allocation6 + $0x58] sm:$0xff]
    %v154 = vld [vmem:[#allocation6 + $0x60] sm:$0xff]
    %v155 = vld [vmem:[#allocation6 + $0x68] sm:$0xff]
    %v156 = vld [vmem:[#allocation6 + $0x70] sm:$0xff]
    %v157 = vld [vmem:[#allocation6 + $0x78] sm:$0xff]
    %v158 = vld [vmem:[#allocation6 + $0x80] sm:$0xff]
    %v159 = vld [vmem:[#allocation6 + $0x88] sm:$0xff]
    %v160 = vld [vmem:[#allocation6 + $0x90] sm:$0xff]
    %v161 = vld [vmem:[#allocation6 + $0x98] sm:$0xff]
    %v162 = vld [vmem:[#allocation6 + $0xa0] sm:$0xff]
    %v163 = vld [vmem:[#allocation6 + $0xa8] sm:$0xff]
    %v164 = vld [vmem:[#allocation6 + $0xb0] sm:$0xff]
    %v165 = vld [vmem:[#allocation6 + $0xb8] sm:$0xff]
    %v166 = vld [vmem:[#allocation6 + $0xc0] sm:$0xff]
    %v167 = vld [vmem:[#allocation6 + $0xc8] sm:$0xff]
    %v168 = vld [vmem:[#allocation6 + $0xd0] sm:$0xff]
    %v169 = vld [vmem:[#allocation6 + $0xd8] sm:$0xff]
    %v170 = vld [vmem:[#allocation6 + $0xe0] sm:$0xff]
    %v171 = vld [vmem:[#allocation6 + $0xe8] sm:$0xff]
    %v172 = vld [vmem:[#allocation6 + $0xf0] sm:$0xff]
    %v173 = vld [vmem:[#allocation6 + $0xf8] sm:$0xff]
    %v174 = vld [vmem:[#allocation6 + $0x100] sm:$0xff]
    %v175 = vld [vmem:[#allocation6 + $0x108] sm:$0xff]
    %v176 = vld [vmem:[#allocation6 + $0x110] sm:$0xff]
    %v177 = vld [vmem:[#allocation6 + $0x118] sm:$0xff]
    %v178 = vld [vmem:[#allocation6 + $0x120] sm:$0xff]
    %v179 = vld [vmem:[#allocation6 + $0x128] sm:$0xff]
    %v180 = vld [vmem:[#allocation6 + $0x130] sm:$0xff]
    %v181 = vld [vmem:[#allocation6 + $0x138] sm:$0xff]
    %v182 = vld [vmem:[#allocation6 + $0x140] sm:$0xff]
    %v183 = vld [vmem:[#allocation6 + $0x148] sm:$0xff]
    %v184 = vld [vmem:[#allocation6 + $0x150] sm:$0xff]
    %v185 = vld [vmem:[#allocation6 + $0x158] sm:$0xff]
    %v186 = vld [vmem:[#allocation6 + $0x160] sm:$0xff]
    %v187 = vld [vmem:[#allocation6 + $0x168] sm:$0xff]
    %v188 = vld [vmem:[#allocation6 + $0x170] sm:$0xff]
    %v189 = vld [vmem:[#allocation6 + $0x178] sm:$0xff]
    %v190 = vld [vmem:[#allocation6 + $0x180] sm:$0xff]
    %v191 = vld [vmem:[#allocation6 + $0x188] sm:$0xff]
    %v192 = vld [vmem:[#allocation6 + $0x190] sm:$0xff]
    %v193 = vld [vmem:[#allocation6 + $0x198] sm:$0xff]
    %v194 = vld [vmem:[#allocation6 + $0x1a0] sm:$0xff]
    %v195 = vld [vmem:[#allocation6 + $0x1a8] sm:$0xff]
    %v196 = vld [vmem:[#allocation6 + $0x1b0] sm:$0xff]
    %v197 = vld [vmem:[#allocation6 + $0x1b8] sm:$0xff]
    %v198 = vld [vmem:[#allocation6 + $0x1c0] sm:$0xff]
    %v199 = vld [vmem:[#allocation6 + $0x1c8] sm:$0xff]
    %v200 = vld [vmem:[#allocation6 + $0x1d0] sm:$0xff]
    %v201 = vld [vmem:[#allocation6 + $0x1d8] sm:$0xff]
    %v202 = vld [vmem:[#allocation6 + $0x1e0] sm:$0xff]
    %v203 = vld [vmem:[#allocation6 + $0x1e8] sm:$0xff]
    %v204 = vld [vmem:[#allocation6 + $0x1f0] sm:$0xff]
    %v205 = vld [vmem:[#allocation6 + $0x1f8] sm:$0xff]
    %v206 = vld [vmem:[#allocation6 + $0x200] sm:$0xff]
    %v207 = vld [vmem:[#allocation6 + $0x208] sm:$0xff]
    %v208 = vld [vmem:[#allocation6 + $0x210] sm:$0xff]
    %v209 = vld [vmem:[#allocation6 + $0x218] sm:$0xff]
    %v210 = vld [vmem:[#allocation6 + $0x220] sm:$0xff]
    %v211 = vld [vmem:[#allocation6 + $0x228] sm:$0xff]
    %v212 = vld [vmem:[#allocation6 + $0x230] sm:$0xff]
    %v213 = vld [vmem:[#allocation6 + $0x238] sm:$0xff]
    %v214 = vld [vmem:[#allocation6 + $0x240] sm:$0xff]
    %v215 = vld [vmem:[#allocation6 + $0x248] sm:$0xff]
    %v216 = vld [vmem:[#allocation6 + $0x250] sm:$0xff]
    %v217 = vld [vmem:[#allocation6 + $0x258] sm:$0xff]
    %v218 = vld [vmem:[#allocation6 + $0x260] sm:$0xff]
    %v219 = vld [vmem:[#allocation6 + $0x268] sm:$0xff]
    %v220 = vld [vmem:[#allocation6 + $0x270] sm:$0xff]
    %v221 = vld [vmem:[#allocation6 + $0x278] sm:$0xff]
    %v222 = vld [vmem:[#allocation6 + $0x280] sm:$0xff]
    %v223 = vld [vmem:[#allocation6 + $0x288] sm:$0xff]
    %v224 = vld [vmem:[#allocation6 + $0x290] sm:$0xff]
    %v225 = vld [vmem:[#allocation6 + $0x298] sm:$0xff]
    %v226 = vld [vmem:[#allocation6 + $0x2a0] sm:$0xff]
    %v227 = vld [vmem:[#allocation6 + $0x2a8] sm:$0xff]
    %v228 = vld [vmem:[#allocation6 + $0x2b0] sm:$0xff]
    %v229 = vld [vmem:[#allocation6 + $0x2b8] sm:$0xff]
    %v230 = vld [vmem:[#allocation6 + $0x2c0] sm:$0xff]
    %v231 = vld [vmem:[#allocation6 + $0x2c8] sm:$0xff]
    %v232 = vld [vmem:[#allocation6 + $0x2d0] sm:$0xff]
    %v233 = vld [vmem:[#allocation6 + $0x2d8] sm:$0xff]
    %v234 = vld [vmem:[#allocation6 + $0x2e0] sm:$0xff]
    %v235 = vld [vmem:[#allocation6 + $0x2e8] sm:$0xff]
    %v236 = vld [vmem:[#allocation6 + $0x2f0] sm:$0xff]
    %v237 = vld [vmem:[#allocation6 + $0x2f8] sm:$0xff]
    %v238 = vld [vmem:[#allocation6 + $0x300] sm:$0xff]
    %v239 = vld [vmem:[#allocation6 + $0x308] sm:$0xff]
    %v240 = vld [vmem:[#allocation6 + $0x310] sm:$0xff]
    %v241 = vld [vmem:[#allocation6 + $0x318] sm:$0xff]
    %v242 = vld [vmem:[#allocation6 + $0x320] sm:$0xff]
    %v243 = vld [vmem:[#allocation6 + $0x328] sm:$0xff]
    %v244 = vld [vmem:[#allocation6 + $0x330] sm:$0xff]
    %v245 = vld [vmem:[#allocation6 + $0x338] sm:$0xff]
    %v246 = vld [vmem:[#allocation6 + $0x340] sm:$0xff]
    %v247 = vld [vmem:[#allocation6 + $0x348] sm:$0xff]
    %v248 = vld [vmem:[#allocation6 + $0x350] sm:$0xff]
    %v249 = vld [vmem:[#allocation6 + $0x358] sm:$0xff]
    %v250 = vld [vmem:[#allocation6 + $0x360] sm:$0xff]
    %v251 = vld [vmem:[#allocation6 + $0x368] sm:$0xff]
    %v252 = vld [vmem:[#allocation6 + $0x370] sm:$0xff]
    %v253 = vld [vmem:[#allocation6 + $0x378] sm:$0xff]
    %v254 = vld [vmem:[#allocation6 + $0x380] sm:$0xff]
    %v255 = vld [vmem:[#allocation6 + $0x388] sm:$0xff]
    %v256 = vld [vmem:[#allocation6 + $0x390] sm:$0xff]
    %v257 = vld [vmem:[#allocation6 + $0x398] sm:$0xff]
    %v258 = vld [vmem:[#allocation6 + $0x3a0] sm:$0xff]
    %v259 = vld [vmem:[#allocation6 + $0x3a8] sm:$0xff]
    %v260 = vld [vmem:[#allocation6 + $0x3b0] sm:$0xff]
    %v261 = vld [vmem:[#allocation6 + $0x3b8] sm:$0xff]
    %v262 = vld [vmem:[#allocation6 + $0x3c0] sm:$0xff]
    %v263 = vld [vmem:[#allocation6 + $0x3c8] sm:$0xff]
    %v264 = vld [vmem:[#allocation6 + $0x3d0] sm:$0xff]
    %v265 = vld [vmem:[#allocation6 + $0x3d8] sm:$0xff]
    %v266 = vld [vmem:[#allocation6 + $0x3e0] sm:$0xff]
    %v267 = vld [vmem:[#allocation6 + $0x3e8] sm:$0xff]
    %v268 = vld [vmem:[#allocation6 + $0x3f0] sm:$0xff]
    %v269 = vld [vmem:[#allocation6 + $0x3f8] sm:$0xff]
    %v270 = vld [vmem:[#allocation11] sm:$0xf]
    %v272 = vperm.slane %v270, 0
    %v273 = vperm.slane %v270, 1
    %v274 = vperm.slane %v270, 2
    %v275 = vperm.slane %v270, 3
    %280 = vmatpush.msra.mxu0 %v202
    %281 = vmatpush.msra.mxu0 %v198
    %282 = vmatpush.msra.mxu0 %v194
    %283 = vmatpush.msra.mxu0 %v190
    %284 = vmatpush.msra.mxu0 %v186
    %285 = vmatpush.msra.mxu0 %v182
    %286 = vmatpush.msra.mxu0 %v178
    %287 = vmatpush.msra.mxu0 %v174
    %288 = vmatpush.msra.mxu0 %v170
    %289 = vmatpush.msra.mxu0 %v166
    %290 = vmatpush.msra.mxu0 %v162
    %291 = vmatpush.msra.mxu0 %v158
    %292 = vmatpush.msra.mxu0 %v154
    %293 = vmatpush.msra.mxu0 %v150
    %294 = vmatpush.msra.mxu0 %v146
    %295 = vmatpush.msra.mxu0 %v142
    %296 = vmatmul.f32.gmra.mxu0 %v138
    %v297 = vpop.f32.mrf.mxu0
    %v298 = vadd.f32 %v272, %v297
    %299 = vmatmul.f32.gmra.mxu0 %v140
    %v300 = vpop.f32.mrf.mxu0
    %v301 = vadd.f32 %v272, %v300
    %302 = vdwg.mxu0
    %303 = vmatpush.msra.mxu0 %v266
    %304 = vmatpush.msra.mxu0 %v262
    %305 = vmatpush.msra.mxu0 %v258
    %306 = vmatpush.msra.mxu0 %v254
    %307 = vmatpush.msra.mxu0 %v250
    %308 = vmatpush.msra.mxu0 %v246
    %309 = vmatpush.msra.mxu0 %v242
    %310 = vmatpush.msra.mxu0 %v238
    %311 = vmatpush.msra.mxu0 %v234
    %312 = vmatpush.msra.mxu0 %v230
    %313 = vmatpush.msra.mxu0 %v226
    %314 = vmatpush.msra.mxu0 %v222
    %315 = vmatpush.msra.mxu0 %v218
    %316 = vmatpush.msra.mxu0 %v214
    %317 = vmatpush.msra.mxu0 %v210
    %318 = vmatpush.msra.mxu0 %v206
    %319 = vmatmul.f32.gmra.mxu0 %v139
    %v320 = vpop.f32.mrf.mxu0
    %v321 = vadd.f32 %v298, %v320
    %322 = vmatmul.f32.gmra.mxu0 %v141
    %v323 = vpop.f32.mrf.mxu0
    %v324 = vadd.f32 %v301, %v323
    %325 = vdwg.mxu0
    %326 = vmatpush.msra.mxu0 %v203
    %327 = vmatpush.msra.mxu0 %v199
    %328 = vmatpush.msra.mxu0 %v195
    %329 = vmatpush.msra.mxu0 %v191
    %330 = vmatpush.msra.mxu0 %v187
    %331 = vmatpush.msra.mxu0 %v183
    %332 = vmatpush.msra.mxu0 %v179
    %333 = vmatpush.msra.mxu0 %v175
    %334 = vmatpush.msra.mxu0 %v171
    %335 = vmatpush.msra.mxu0 %v167
    %336 = vmatpush.msra.mxu0 %v163
    %337 = vmatpush.msra.mxu0 %v159
    %338 = vmatpush.msra.mxu0 %v155
    %339 = vmatpush.msra.mxu0 %v151
    %340 = vmatpush.msra.mxu0 %v147
    %341 = vmatpush.msra.mxu0 %v143
    %342 = vmatmul.f32.gmra.mxu0 %v138
    %v343 = vpop.f32.mrf.mxu0
    %v344 = vadd.f32 %v273, %v343
    %345 = vmatmul.f32.gmra.mxu0 %v140
    %v346 = vpop.f32.mrf.mxu0
    %v347 = vadd.f32 %v273, %v346
    %348 = vdwg.mxu0
    %349 = vmatpush.msra.mxu0 %v267
    %350 = vmatpush.msra.mxu0 %v263
    %351 = vmatpush.msra.mxu0 %v259
    %352 = vmatpush.msra.mxu0 %v255
    %353 = vmatpush.msra.mxu0 %v251
    %354 = vmatpush.msra.mxu0 %v247
    %355 = vmatpush.msra.mxu0 %v243
    %356 = vmatpush.msra.mxu0 %v239
    %357 = vmatpush.msra.mxu0 %v235
    %358 = vmatpush.msra.mxu0 %v231
    %359 = vmatpush.msra.mxu0 %v227
    %360 = vmatpush.msra.mxu0 %v223
    %361 = vmatpush.msra.mxu0 %v219
    %362 = vmatpush.msra.mxu0 %v215
    %363 = vmatpush.msra.mxu0 %v211
    %364 = vmatpush.msra.mxu0 %v207
    %365 = vmatmul.f32.gmra.mxu0 %v139
    %v366 = vpop.f32.mrf.mxu0
    %v367 = vadd.f32 %v344, %v366
    %368 = vmatmul.f32.gmra.mxu0 %v141
    %v369 = vpop.f32.mrf.mxu0
    %v370 = vadd.f32 %v347, %v369
    %371 = vdwg.mxu0
    %372 = vmatpush.msra.mxu0 %v204
    %373 = vmatpush.msra.mxu0 %v200
    %374 = vmatpush.msra.mxu0 %v196
    %375 = vmatpush.msra.mxu0 %v192
    %376 = vmatpush.msra.mxu0 %v188
    %377 = vmatpush.msra.mxu0 %v184
    %378 = vmatpush.msra.mxu0 %v180
    %379 = vmatpush.msra.mxu0 %v176
    %380 = vmatpush.msra.mxu0 %v172
    %381 = vmatpush.msra.mxu0 %v168
    %382 = vmatpush.msra.mxu0 %v164
    %383 = vmatpush.msra.mxu0 %v160
    %384 = vmatpush.msra.mxu0 %v156
    %385 = vmatpush.msra.mxu0 %v152
    %386 = vmatpush.msra.mxu0 %v148
    %387 = vmatpush.msra.mxu0 %v144
    %388 = vmatmul.f32.gmra.mxu0 %v138
    %v389 = vpop.f32.mrf.mxu0
    %v390 = vadd.f32 %v274, %v389
    %391 = vmatmul.f32.gmra.mxu0 %v140
    %v392 = vpop.f32.mrf.mxu0
    %v393 = vadd.f32 %v274, %v392
    %394 = vdwg.mxu0
    %395 = vmatpush.msra.mxu0 %v268
    %396 = vmatpush.msra.mxu0 %v264
    %397 = vmatpush.msra.mxu0 %v260
    %398 = vmatpush.msra.mxu0 %v256
    %399 = vmatpush.msra.mxu0 %v252
    %400 = vmatpush.msra.mxu0 %v248
    %401 = vmatpush.msra.mxu0 %v244
    %402 = vmatpush.msra.mxu0 %v240
    %403 = vmatpush.msra.mxu0 %v236
    %404 = vmatpush.msra.mxu0 %v232
    %405 = vmatpush.msra.mxu0 %v228
    %406 = vmatpush.msra.mxu0 %v224
    %407 = vmatpush.msra.mxu0 %v220
    %408 = vmatpush.msra.mxu0 %v216
    %409 = vmatpush.msra.mxu0 %v212
    %410 = vmatpush.msra.mxu0 %v208
    %411 = vmatmul.f32.gmra.mxu0 %v139
    %v412 = vpop.f32.mrf.mxu0
    %v413 = vadd.f32 %v390, %v412
    %414 = vmatmul.f32.gmra.mxu0 %v141
    %v415 = vpop.f32.mrf.mxu0
    %v416 = vadd.f32 %v393, %v415
    %417 = vdwg.mxu0
    %418 = vmatpush.msra.mxu0 %v205
    %419 = vmatpush.msra.mxu0 %v201
    %420 = vmatpush.msra.mxu0 %v197
    %421 = vmatpush.msra.mxu0 %v193
    %422 = vmatpush.msra.mxu0 %v189
    %423 = vmatpush.msra.mxu0 %v185
    %424 = vmatpush.msra.mxu0 %v181
    %425 = vmatpush.msra.mxu0 %v177
    %426 = vmatpush.msra.mxu0 %v173
    %427 = vmatpush.msra.mxu0 %v169
    %428 = vmatpush.msra.mxu0 %v165
    %429 = vmatpush.msra.mxu0 %v161
    %430 = vmatpush.msra.mxu0 %v157
    %431 = vmatpush.msra.mxu0 %v153
    %432 = vmatpush.msra.mxu0 %v149
    %433 = vmatpush.msra.mxu0 %v145
    %434 = vmatmul.f32.gmra.mxu0 %v138
    %v435 = vpop.f32.mrf.mxu0
    %v436 = vadd.f32 %v275, %v435
    %437 = vmatmul.f32.gmra.mxu0 %v140
    %v438 = vpop.f32.mrf.mxu0
    %v439 = vadd.f32 %v275, %v438
    %440 = vdwg.mxu0
    %441 = vmatpush.msra.mxu0 %v269
    %442 = vmatpush.msra.mxu0 %v265
    %443 = vmatpush.msra.mxu0 %v261
    %444 = vmatpush.msra.mxu0 %v257
    %445 = vmatpush.msra.mxu0 %v253
    %446 = vmatpush.msra.mxu0 %v249
    %447 = vmatpush.msra.mxu0 %v245
    %448 = vmatpush.msra.mxu0 %v241
    %449 = vmatpush.msra.mxu0 %v237
    %450 = vmatpush.msra.mxu0 %v233
    %451 = vmatpush.msra.mxu0 %v229
    %452 = vmatpush.msra.mxu0 %v225
    %453 = vmatpush.msra.mxu0 %v221
    %454 = vmatpush.msra.mxu0 %v217
    %455 = vmatpush.msra.mxu0 %v213
    %456 = vmatpush.msra.mxu0 %v209
    %457 = vmatmul.f32.gmra.mxu0 %v139
    %v458 = vpop.f32.mrf.mxu0
    %v459 = vadd.f32 %v436, %v458
    %460 = vmatmul.f32.gmra.mxu0 %v141
    %v461 = vpop.f32.mrf.mxu0
    %v462 = vadd.f32 %v439, %v461
    %463 = vdwg.mxu0
    %v464 = vld [vmem:[#allocation8] sm:$0xff]
    %v465 = vld [vmem:[#allocation8 + $0x8] sm:$0xff]
    %v466 = vld [vmem:[#allocation8 + $0x10] sm:$0xff]
    %v467 = vld [vmem:[#allocation8 + $0x18] sm:$0xff]
    %v468 = vld [vmem:[#allocation8 + $0x20] sm:$0xff]
    %v469 = vld [vmem:[#allocation8 + $0x28] sm:$0xff]
    %v470 = vld [vmem:[#allocation8 + $0x30] sm:$0xff]
    %v471 = vld [vmem:[#allocation8 + $0x38] sm:$0xff]
    %v472 = vld [vmem:[#allocation8 + $0x40] sm:$0xff]
    %v473 = vld [vmem:[#allocation8 + $0x48] sm:$0xff]
    %v474 = vld [vmem:[#allocation8 + $0x50] sm:$0xff]
    %v475 = vld [vmem:[#allocation8 + $0x58] sm:$0xff]
    %v476 = vld [vmem:[#allocation8 + $0x60] sm:$0xff]
    %v477 = vld [vmem:[#allocation8 + $0x68] sm:$0xff]
    %v478 = vld [vmem:[#allocation8 + $0x70] sm:$0xff]
    %v479 = vld [vmem:[#allocation8 + $0x78] sm:$0xff]
    %v480 = vld [vmem:[#allocation8 + $0x80] sm:$0xff]
    %v481 = vld [vmem:[#allocation8 + $0x88] sm:$0xff]
    %v482 = vld [vmem:[#allocation8 + $0x90] sm:$0xff]
    %v483 = vld [vmem:[#allocation8 + $0x98] sm:$0xff]
    %v484 = vld [vmem:[#allocation8 + $0xa0] sm:$0xff]
    %v485 = vld [vmem:[#allocation8 + $0xa8] sm:$0xff]
    %v486 = vld [vmem:[#allocation8 + $0xb0] sm:$0xff]
    %v487 = vld [vmem:[#allocation8 + $0xb8] sm:$0xff]
    %v488 = vld [vmem:[#allocation8 + $0xc0] sm:$0xff]
    %v489 = vld [vmem:[#allocation8 + $0xc8] sm:$0xff]
    %v490 = vld [vmem:[#allocation8 + $0xd0] sm:$0xff]
    %v491 = vld [vmem:[#allocation8 + $0xd8] sm:$0xff]
    %v492 = vld [vmem:[#allocation8 + $0xe0] sm:$0xff]
    %v493 = vld [vmem:[#allocation8 + $0xe8] sm:$0xff]
    %v494 = vld [vmem:[#allocation8 + $0xf0] sm:$0xff]
    %v495 = vld [vmem:[#allocation8 + $0xf8] sm:$0xff]
    %v496 = vld [vmem:[#allocation8 + $0x100] sm:$0xff]
    %v497 = vld [vmem:[#allocation8 + $0x108] sm:$0xff]
    %v498 = vld [vmem:[#allocation8 + $0x110] sm:$0xff]
    %v499 = vld [vmem:[#allocation8 + $0x118] sm:$0xff]
    %v500 = vld [vmem:[#allocation8 + $0x120] sm:$0xff]
    %v501 = vld [vmem:[#allocation8 + $0x128] sm:$0xff]
    %v502 = vld [vmem:[#allocation8 + $0x130] sm:$0xff]
    %v503 = vld [vmem:[#allocation8 + $0x138] sm:$0xff]
    %v504 = vld [vmem:[#allocation8 + $0x140] sm:$0xff]
    %v505 = vld [vmem:[#allocation8 + $0x148] sm:$0xff]
    %v506 = vld [vmem:[#allocation8 + $0x150] sm:$0xff]
    %v507 = vld [vmem:[#allocation8 + $0x158] sm:$0xff]
    %v508 = vld [vmem:[#allocation8 + $0x160] sm:$0xff]
    %v509 = vld [vmem:[#allocation8 + $0x168] sm:$0xff]
    %v510 = vld [vmem:[#allocation8 + $0x170] sm:$0xff]
    %v511 = vld [vmem:[#allocation8 + $0x178] sm:$0xff]
    %v512 = vld [vmem:[#allocation8 + $0x180] sm:$0xff]
    %v513 = vld [vmem:[#allocation8 + $0x188] sm:$0xff]
    %v514 = vld [vmem:[#allocation8 + $0x190] sm:$0xff]
    %v515 = vld [vmem:[#allocation8 + $0x198] sm:$0xff]
    %v516 = vld [vmem:[#allocation8 + $0x1a0] sm:$0xff]
    %v517 = vld [vmem:[#allocation8 + $0x1a8] sm:$0xff]
    %v518 = vld [vmem:[#allocation8 + $0x1b0] sm:$0xff]
    %v519 = vld [vmem:[#allocation8 + $0x1b8] sm:$0xff]
    %v520 = vld [vmem:[#allocation8 + $0x1c0] sm:$0xff]
    %v521 = vld [vmem:[#allocation8 + $0x1c8] sm:$0xff]
    %v522 = vld [vmem:[#allocation8 + $0x1d0] sm:$0xff]
    %v523 = vld [vmem:[#allocation8 + $0x1d8] sm:$0xff]
    %v524 = vld [vmem:[#allocation8 + $0x1e0] sm:$0xff]
    %v525 = vld [vmem:[#allocation8 + $0x1e8] sm:$0xff]
    %v526 = vld [vmem:[#allocation8 + $0x1f0] sm:$0xff]
    %v527 = vld [vmem:[#allocation8 + $0x1f8] sm:$0xff]
    %v528 = vld [vmem:[#allocation8 + $0x200] sm:$0xff]
    %v529 = vld [vmem:[#allocation8 + $0x208] sm:$0xff]
    %v530 = vld [vmem:[#allocation8 + $0x210] sm:$0xff]
    %v531 = vld [vmem:[#allocation8 + $0x218] sm:$0xff]
    %v532 = vld [vmem:[#allocation8 + $0x220] sm:$0xff]
    %v533 = vld [vmem:[#allocation8 + $0x228] sm:$0xff]
    %v534 = vld [vmem:[#allocation8 + $0x230] sm:$0xff]
    %v535 = vld [vmem:[#allocation8 + $0x238] sm:$0xff]
    %v536 = vld [vmem:[#allocation8 + $0x240] sm:$0xff]
    %v537 = vld [vmem:[#allocation8 + $0x248] sm:$0xff]
    %v538 = vld [vmem:[#allocation8 + $0x250] sm:$0xff]
    %v539 = vld [vmem:[#allocation8 + $0x258] sm:$0xff]
    %v540 = vld [vmem:[#allocation8 + $0x260] sm:$0xff]
    %v541 = vld [vmem:[#allocation8 + $0x268] sm:$0xff]
    %v542 = vld [vmem:[#allocation8 + $0x270] sm:$0xff]
    %v543 = vld [vmem:[#allocation8 + $0x278] sm:$0xff]
    %v544 = vld [vmem:[#allocation8 + $0x280] sm:$0xff]
    %v545 = vld [vmem:[#allocation8 + $0x288] sm:$0xff]
    %v546 = vld [vmem:[#allocation8 + $0x290] sm:$0xff]
    %v547 = vld [vmem:[#allocation8 + $0x298] sm:$0xff]
    %v548 = vld [vmem:[#allocation8 + $0x2a0] sm:$0xff]
    %v549 = vld [vmem:[#allocation8 + $0x2a8] sm:$0xff]
    %v550 = vld [vmem:[#allocation8 + $0x2b0] sm:$0xff]
    %v551 = vld [vmem:[#allocation8 + $0x2b8] sm:$0xff]
    %v552 = vld [vmem:[#allocation8 + $0x2c0] sm:$0xff]
    %v553 = vld [vmem:[#allocation8 + $0x2c8] sm:$0xff]
    %v554 = vld [vmem:[#allocation8 + $0x2d0] sm:$0xff]
    %v555 = vld [vmem:[#allocation8 + $0x2d8] sm:$0xff]
    %v556 = vld [vmem:[#allocation8 + $0x2e0] sm:$0xff]
    %v557 = vld [vmem:[#allocation8 + $0x2e8] sm:$0xff]
    %v558 = vld [vmem:[#allocation8 + $0x2f0] sm:$0xff]
    %v559 = vld [vmem:[#allocation8 + $0x2f8] sm:$0xff]
    %v560 = vld [vmem:[#allocation8 + $0x300] sm:$0xff]
    %v561 = vld [vmem:[#allocation8 + $0x308] sm:$0xff]
    %v562 = vld [vmem:[#allocation8 + $0x310] sm:$0xff]
    %v563 = vld [vmem:[#allocation8 + $0x318] sm:$0xff]
    %v564 = vld [vmem:[#allocation8 + $0x320] sm:$0xff]
    %v565 = vld [vmem:[#allocation8 + $0x328] sm:$0xff]
    %v566 = vld [vmem:[#allocation8 + $0x330] sm:$0xff]
    %v567 = vld [vmem:[#allocation8 + $0x338] sm:$0xff]
    %v568 = vld [vmem:[#allocation8 + $0x340] sm:$0xff]
    %v569 = vld [vmem:[#allocation8 + $0x348] sm:$0xff]
    %v570 = vld [vmem:[#allocation8 + $0x350] sm:$0xff]
    %v571 = vld [vmem:[#allocation8 + $0x358] sm:$0xff]
    %v572 = vld [vmem:[#allocation8 + $0x360] sm:$0xff]
    %v573 = vld [vmem:[#allocation8 + $0x368] sm:$0xff]
    %v574 = vld [vmem:[#allocation8 + $0x370] sm:$0xff]
    %v575 = vld [vmem:[#allocation8 + $0x378] sm:$0xff]
    %v576 = vld [vmem:[#allocation8 + $0x380] sm:$0xff]
    %v577 = vld [vmem:[#allocation8 + $0x388] sm:$0xff]
    %v578 = vld [vmem:[#allocation8 + $0x390] sm:$0xff]
    %v579 = vld [vmem:[#allocation8 + $0x398] sm:$0xff]
    %v580 = vld [vmem:[#allocation8 + $0x3a0] sm:$0xff]
    %v581 = vld [vmem:[#allocation8 + $0x3a8] sm:$0xff]
    %v582 = vld [vmem:[#allocation8 + $0x3b0] sm:$0xff]
    %v583 = vld [vmem:[#allocation8 + $0x3b8] sm:$0xff]
    %v584 = vld [vmem:[#allocation8 + $0x3c0] sm:$0xff]
    %v585 = vld [vmem:[#allocation8 + $0x3c8] sm:$0xff]
    %v586 = vld [vmem:[#allocation8 + $0x3d0] sm:$0xff]
    %v587 = vld [vmem:[#allocation8 + $0x3d8] sm:$0xff]
    %v588 = vld [vmem:[#allocation8 + $0x3e0] sm:$0xff]
    %v589 = vld [vmem:[#allocation8 + $0x3e8] sm:$0xff]
    %v590 = vld [vmem:[#allocation8 + $0x3f0] sm:$0xff]
    %v591 = vld [vmem:[#allocation8 + $0x3f8] sm:$0xff]
    %v592 = vld [vmem:[#allocation12] sm:$0xf]
    %v594 = vperm.slane %v592, 0
    %v595 = vperm.slane %v592, 1
    %v596 = vperm.slane %v592, 2
    %v597 = vperm.slane %v592, 3
    %602 = vmatpush.msra.mxu0 %v524
    %603 = vmatpush.msra.mxu0 %v520
    %604 = vmatpush.msra.mxu0 %v516
    %605 = vmatpush.msra.mxu0 %v512
    %606 = vmatpush.msra.mxu0 %v508
    %607 = vmatpush.msra.mxu0 %v504
    %608 = vmatpush.msra.mxu0 %v500
    %609 = vmatpush.msra.mxu0 %v496
    %610 = vmatpush.msra.mxu0 %v492
    %611 = vmatpush.msra.mxu0 %v488
    %612 = vmatpush.msra.mxu0 %v484
    %613 = vmatpush.msra.mxu0 %v480
    %614 = vmatpush.msra.mxu0 %v476
    %615 = vmatpush.msra.mxu0 %v472
    %616 = vmatpush.msra.mxu0 %v468
    %617 = vmatpush.msra.mxu0 %v464
    %618 = vmatmul.f32.gmra.mxu0 %v138
    %v619 = vpop.f32.mrf.mxu0
    %v620 = vadd.f32 %v594, %v619
    %621 = vmatmul.f32.gmra.mxu0 %v140
    %v622 = vpop.f32.mrf.mxu0
    %v623 = vadd.f32 %v594, %v622
    %624 = vdwg.mxu0
    %625 = vmatpush.msra.mxu0 %v588
    %626 = vmatpush.msra.mxu0 %v584
    %627 = vmatpush.msra.mxu0 %v580
    %628 = vmatpush.msra.mxu0 %v576
    %629 = vmatpush.msra.mxu0 %v572
    %630 = vmatpush.msra.mxu0 %v568
    %631 = vmatpush.msra.mxu0 %v564
    %632 = vmatpush.msra.mxu0 %v560
    %633 = vmatpush.msra.mxu0 %v556
    %634 = vmatpush.msra.mxu0 %v552
    %635 = vmatpush.msra.mxu0 %v548
    %636 = vmatpush.msra.mxu0 %v544
    %637 = vmatpush.msra.mxu0 %v540
    %638 = vmatpush.msra.mxu0 %v536
    %639 = vmatpush.msra.mxu0 %v532
    %640 = vmatpush.msra.mxu0 %v528
    %641 = vmatmul.f32.gmra.mxu0 %v139
    %v642 = vpop.f32.mrf.mxu0
    %v643 = vadd.f32 %v620, %v642
    %644 = vmatmul.f32.gmra.mxu0 %v141
    %v645 = vpop.f32.mrf.mxu0
    %v646 = vadd.f32 %v623, %v645
    %647 = vdwg.mxu0
    %648 = vmatpush.msra.mxu0 %v525
    %649 = vmatpush.msra.mxu0 %v521
    %650 = vmatpush.msra.mxu0 %v517
    %651 = vmatpush.msra.mxu0 %v513
    %652 = vmatpush.msra.mxu0 %v509
    %653 = vmatpush.msra.mxu0 %v505
    %654 = vmatpush.msra.mxu0 %v501
    %655 = vmatpush.msra.mxu0 %v497
    %656 = vmatpush.msra.mxu0 %v493
    %657 = vmatpush.msra.mxu0 %v489
    %658 = vmatpush.msra.mxu0 %v485
    %659 = vmatpush.msra.mxu0 %v481
    %660 = vmatpush.msra.mxu0 %v477
    %661 = vmatpush.msra.mxu0 %v473
    %662 = vmatpush.msra.mxu0 %v469
    %663 = vmatpush.msra.mxu0 %v465
    %664 = vmatmul.f32.gmra.mxu0 %v138
    %v665 = vpop.f32.mrf.mxu0
    %v666 = vadd.f32 %v595, %v665
    %667 = vmatmul.f32.gmra.mxu0 %v140
    %v668 = vpop.f32.mrf.mxu0
    %v669 = vadd.f32 %v595, %v668
    %670 = vdwg.mxu0
    %671 = vmatpush.msra.mxu0 %v589
    %672 = vmatpush.msra.mxu0 %v585
    %673 = vmatpush.msra.mxu0 %v581
    %674 = vmatpush.msra.mxu0 %v577
    %675 = vmatpush.msra.mxu0 %v573
    %676 = vmatpush.msra.mxu0 %v569
    %677 = vmatpush.msra.mxu0 %v565
    %678 = vmatpush.msra.mxu0 %v561
    %679 = vmatpush.msra.mxu0 %v557
    %680 = vmatpush.msra.mxu0 %v553
    %681 = vmatpush.msra.mxu0 %v549
    %682 = vmatpush.msra.mxu0 %v545
    %683 = vmatpush.msra.mxu0 %v541
    %684 = vmatpush.msra.mxu0 %v537
    %685 = vmatpush.msra.mxu0 %v533
    %686 = vmatpush.msra.mxu0 %v529
    %687 = vmatmul.f32.gmra.mxu0 %v139
    %v688 = vpop.f32.mrf.mxu0
    %v689 = vadd.f32 %v666, %v688
    %690 = vmatmul.f32.gmra.mxu0 %v141
    %v691 = vpop.f32.mrf.mxu0
    %v692 = vadd.f32 %v669, %v691
    %693 = vdwg.mxu0
    %694 = vmatpush.msra.mxu0 %v526
    %695 = vmatpush.msra.mxu0 %v522
    %696 = vmatpush.msra.mxu0 %v518
    %697 = vmatpush.msra.mxu0 %v514
    %698 = vmatpush.msra.mxu0 %v510
    %699 = vmatpush.msra.mxu0 %v506
    %700 = vmatpush.msra.mxu0 %v502
    %701 = vmatpush.msra.mxu0 %v498
    %702 = vmatpush.msra.mxu0 %v494
    %703 = vmatpush.msra.mxu0 %v490
    %704 = vmatpush.msra.mxu0 %v486
    %705 = vmatpush.msra.mxu0 %v482
    %706 = vmatpush.msra.mxu0 %v478
    %707 = vmatpush.msra.mxu0 %v474
    %708 = vmatpush.msra.mxu0 %v470
    %709 = vmatpush.msra.mxu0 %v466
    %710 = vmatmul.f32.gmra.mxu0 %v138
    %v711 = vpop.f32.mrf.mxu0
    %v712 = vadd.f32 %v596, %v711
    %713 = vmatmul.f32.gmra.mxu0 %v140
    %v714 = vpop.f32.mrf.mxu0
    %v715 = vadd.f32 %v596, %v714
    %716 = vdwg.mxu0
    %717 = vmatpush.msra.mxu0 %v590
    %718 = vmatpush.msra.mxu0 %v586
    %719 = vmatpush.msra.mxu0 %v582
    %720 = vmatpush.msra.mxu0 %v578
    %721 = vmatpush.msra.mxu0 %v574
    %722 = vmatpush.msra.mxu0 %v570
    %723 = vmatpush.msra.mxu0 %v566
    %724 = vmatpush.msra.mxu0 %v562
    %725 = vmatpush.msra.mxu0 %v558
    %726 = vmatpush.msra.mxu0 %v554
    %727 = vmatpush.msra.mxu0 %v550
    %728 = vmatpush.msra.mxu0 %v546
    %729 = vmatpush.msra.mxu0 %v542
    %730 = vmatpush.msra.mxu0 %v538
    %731 = vmatpush.msra.mxu0 %v534
    %732 = vmatpush.msra.mxu0 %v530
    %733 = vmatmul.f32.gmra.mxu0 %v139
    %v734 = vpop.f32.mrf.mxu0
    %v735 = vadd.f32 %v712, %v734
    %736 = vmatmul.f32.gmra.mxu0 %v141
    %v737 = vpop.f32.mrf.mxu0
    %v738 = vadd.f32 %v715, %v737
    %739 = vdwg.mxu0
    %740 = vmatpush.msra.mxu0 %v527
    %741 = vmatpush.msra.mxu0 %v523
    %742 = vmatpush.msra.mxu0 %v519
    %743 = vmatpush.msra.mxu0 %v515
    %744 = vmatpush.msra.mxu0 %v511
    %745 = vmatpush.msra.mxu0 %v507
    %746 = vmatpush.msra.mxu0 %v503
    %747 = vmatpush.msra.mxu0 %v499
    %748 = vmatpush.msra.mxu0 %v495
    %749 = vmatpush.msra.mxu0 %v491
    %750 = vmatpush.msra.mxu0 %v487
    %751 = vmatpush.msra.mxu0 %v483
    %752 = vmatpush.msra.mxu0 %v479
    %753 = vmatpush.msra.mxu0 %v475
    %754 = vmatpush.msra.mxu0 %v471
    %755 = vmatpush.msra.mxu0 %v467
    %756 = vmatmul.f32.gmra.mxu0 %v138
    %v757 = vpop.f32.mrf.mxu0
    %v758 = vadd.f32 %v597, %v757
    %759 = vmatmul.f32.gmra.mxu0 %v140
    %v760 = vpop.f32.mrf.mxu0
    %v761 = vadd.f32 %v597, %v760
    %762 = vdwg.mxu0
    %763 = vmatpush.msra.mxu0 %v591
    %764 = vmatpush.msra.mxu0 %v587
    %765 = vmatpush.msra.mxu0 %v583
    %766 = vmatpush.msra.mxu0 %v579
    %767 = vmatpush.msra.mxu0 %v575
    %768 = vmatpush.msra.mxu0 %v571
    %769 = vmatpush.msra.mxu0 %v567
    %770 = vmatpush.msra.mxu0 %v563
    %771 = vmatpush.msra.mxu0 %v559
    %772 = vmatpush.msra.mxu0 %v555
    %773 = vmatpush.msra.mxu0 %v551
    %774 = vmatpush.msra.mxu0 %v547
    %775 = vmatpush.msra.mxu0 %v543
    %776 = vmatpush.msra.mxu0 %v539
    %777 = vmatpush.msra.mxu0 %v535
    %778 = vmatpush.msra.mxu0 %v531
    %779 = vmatmul.f32.gmra.mxu0 %v139
    %v780 = vpop.f32.mrf.mxu0
    %v781 = vadd.f32 %v758, %v780
    %782 = vmatmul.f32.gmra.mxu0 %v141
    %v783 = vpop.f32.mrf.mxu0
    %v784 = vadd.f32 %v761, %v783
    %785 = vdwg.mxu0
    %v786 = vxor.u32 %v321, 2147483648
    %v787 = vxor.u32 %v367, 2147483648
    %v788 = vxor.u32 %v413, 2147483648
    %v789 = vxor.u32 %v459, 2147483648
    %v790 = vxor.u32 %v324, 2147483648
    %v791 = vxor.u32 %v370, 2147483648
    %v792 = vxor.u32 %v416, 2147483648
    %v793 = vxor.u32 %v462, 2147483648
    %v794 = vmul.f32 %v786, 1.442695
    %v795 = vpow.pop %v794
    %v796 = vmul.f32 %v787, 1.442695
    %v797 = vpow.pop %v796
    %v798 = vmul.f32 %v788, 1.442695
    %v799 = vpow.pop %v798
    %v800 = vmul.f32 %v789, 1.442695
    %v801 = vpow.pop %v800
    %v802 = vmul.f32 %v790, 1.442695
    %v803 = vpow.pop %v802
    %v804 = vmul.f32 %v791, 1.442695
    %v805 = vpow.pop %v804
    %v806 = vmul.f32 %v792, 1.442695
    %v807 = vpow.pop %v806
    %v808 = vmul.f32 %v793, 1.442695
    %v809 = vpow.pop %v808
    %v810 = vadd.f32 %v795, 1.0
    %v811 = vadd.f32 %v797, 1.0
    %v812 = vadd.f32 %v799, 1.0
    %v813 = vadd.f32 %v801, 1.0
    %v814 = vadd.f32 %v803, 1.0
    %v815 = vadd.f32 %v805, 1.0
    %v816 = vadd.f32 %v807, 1.0
    %v817 = vadd.f32 %v809, 1.0
    %v818 = vrcp.pop %v810
    %v819 = vmul.f32 %v810, %v818
    %v820 = vsub.f32 1.0, %v819
    %v821 = vmul.f32 %v818, %v820
    %v822 = vadd.f32 %v818, %v821
    %vm823 = vweird.f32 %v810
    %vm824 = vweird.f32 %v818
    %vm825 = vmor %vm823, %vm824
    %v826 = vsel %vm825, %v818, %v822
    %v827 = vand.u32 2147483647, %v810
    %vm828 = vcmp.eq.f32.partialorder %v827, 8.507059e+37
    %v829 = vand.u32 %v810, 2147483648
    %v830 = vor.u32 1.1754944e-38, %v829
    %v831 = vsel %vm828, %v830, %v826
    %v832 = vmul.f32 1.0, %v831
    %v833 = vrcp.pop %v811
    %v834 = vmul.f32 %v811, %v833
    %v835 = vsub.f32 1.0, %v834
    %v836 = vmul.f32 %v833, %v835
    %v837 = vadd.f32 %v833, %v836
    %vm838 = vweird.f32 %v811
    %vm839 = vweird.f32 %v833
    %vm840 = vmor %vm838, %vm839
    %v841 = vsel %vm840, %v833, %v837
    %v842 = vand.u32 2147483647, %v811
    %vm843 = vcmp.eq.f32.partialorder %v842, 8.507059e+37
    %v844 = vand.u32 %v811, 2147483648
    %v845 = vor.u32 1.1754944e-38, %v844
    %v846 = vsel %vm843, %v845, %v841
    %v847 = vmul.f32 1.0, %v846
    %v848 = vrcp.pop %v812
    %v849 = vmul.f32 %v812, %v848
    %v850 = vsub.f32 1.0, %v849
    %v851 = vmul.f32 %v848, %v850
    %v852 = vadd.f32 %v848, %v851
    %vm853 = vweird.f32 %v812
    %vm854 = vweird.f32 %v848
    %vm855 = vmor %vm853, %vm854
    %v856 = vsel %vm855, %v848, %v852
    %v857 = vand.u32 2147483647, %v812
    %vm858 = vcmp.eq.f32.partialorder %v857, 8.507059e+37
    %v859 = vand.u32 %v812, 2147483648
    %v860 = vor.u32 1.1754944e-38, %v859
    %v861 = vsel %vm858, %v860, %v856
    %v862 = vmul.f32 1.0, %v861
    %v863 = vrcp.pop %v813
    %v864 = vmul.f32 %v813, %v863
    %v865 = vsub.f32 1.0, %v864
    %v866 = vmul.f32 %v863, %v865
    %v867 = vadd.f32 %v863, %v866
    %vm868 = vweird.f32 %v813
    %vm869 = vweird.f32 %v863
    %vm870 = vmor %vm868, %vm869
    %v871 = vsel %vm870, %v863, %v867
    %v872 = vand.u32 2147483647, %v813
    %vm873 = vcmp.eq.f32.partialorder %v872, 8.507059e+37
    %v874 = vand.u32 %v813, 2147483648
    %v875 = vor.u32 1.1754944e-38, %v874
    %v876 = vsel %vm873, %v875, %v871
    %v877 = vmul.f32 1.0, %v876
    %v878 = vrcp.pop %v814
    %v879 = vmul.f32 %v814, %v878
    %v880 = vsub.f32 1.0, %v879
    %v881 = vmul.f32 %v878, %v880
    %v882 = vadd.f32 %v878, %v881
    %vm883 = vweird.f32 %v814
    %vm884 = vweird.f32 %v878
    %vm885 = vmor %vm883, %vm884
    %v886 = vsel %vm885, %v878, %v882
    %v887 = vand.u32 2147483647, %v814
    %vm888 = vcmp.eq.f32.partialorder %v887, 8.507059e+37
    %v889 = vand.u32 %v814, 2147483648
    %v890 = vor.u32 1.1754944e-38, %v889
    %v891 = vsel %vm888, %v890, %v886
    %v892 = vmul.f32 1.0, %v891
    %v893 = vrcp.pop %v815
    %v894 = vmul.f32 %v815, %v893
    %v895 = vsub.f32 1.0, %v894
    %v896 = vmul.f32 %v893, %v895
    %v897 = vadd.f32 %v893, %v896
    %vm898 = vweird.f32 %v815
    %vm899 = vweird.f32 %v893
    %vm900 = vmor %vm898, %vm899
    %v901 = vsel %vm900, %v893, %v897
    %v902 = vand.u32 2147483647, %v815
    %vm903 = vcmp.eq.f32.partialorder %v902, 8.507059e+37
    %v904 = vand.u32 %v815, 2147483648
    %v905 = vor.u32 1.1754944e-38, %v904
    %v906 = vsel %vm903, %v905, %v901
    %v907 = vmul.f32 1.0, %v906
    %v908 = vrcp.pop %v816
    %v909 = vmul.f32 %v816, %v908
    %v910 = vsub.f32 1.0, %v909
    %v911 = vmul.f32 %v908, %v910
    %v912 = vadd.f32 %v908, %v911
    %vm913 = vweird.f32 %v816
    %vm914 = vweird.f32 %v908
    %vm915 = vmor %vm913, %vm914
    %v916 = vsel %vm915, %v908, %v912
    %v917 = vand.u32 2147483647, %v816
    %vm918 = vcmp.eq.f32.partialorder %v917, 8.507059e+37
    %v919 = vand.u32 %v816, 2147483648
    %v920 = vor.u32 1.1754944e-38, %v919
    %v921 = vsel %vm918, %v920, %v916
    %v922 = vmul.f32 1.0, %v921
    %v923 = vrcp.pop %v817
    %v924 = vmul.f32 %v817, %v923
    %v925 = vsub.f32 1.0, %v924
    %v926 = vmul.f32 %v923, %v925
    %v927 = vadd.f32 %v923, %v926
    %vm928 = vweird.f32 %v817
    %vm929 = vweird.f32 %v923
    %vm930 = vmor %vm928, %vm929
    %v931 = vsel %vm930, %v923, %v927
    %v932 = vand.u32 2147483647, %v817
    %vm933 = vcmp.eq.f32.partialorder %v932, 8.507059e+37
    %v934 = vand.u32 %v817, 2147483648
    %v935 = vor.u32 1.1754944e-38, %v934
    %v936 = vsel %vm933, %v935, %v931
    %v937 = vmul.f32 1.0, %v936
    %v938 = vmul.f32 %v321, %v832
    %v939 = vmul.f32 %v367, %v847
    %v940 = vmul.f32 %v413, %v862
    %v941 = vmul.f32 %v459, %v877
    %v942 = vmul.f32 %v324, %v892
    %v943 = vmul.f32 %v370, %v907
    %v944 = vmul.f32 %v416, %v922
    %v945 = vmul.f32 %v462, %v937
    %v946 = vmul.f32 %v938, %v643
    %v947 = vmul.f32 %v939, %v689
    %v948 = vmul.f32 %v940, %v735
    %v949 = vmul.f32 %v941, %v781
    %v950 = vmul.f32 %v942, %v646
    %v951 = vmul.f32 %v943, %v692
    %v952 = vmul.f32 %v944, %v738
    %v953 = vmul.f32 %v945, %v784
    %v954 = vld [vmem:[#allocation2] sm:$0xff]
    %v955 = vld [vmem:[#allocation2 + $0x8] sm:$0xff]
    %v956 = vld [vmem:[#allocation2 + $0x10] sm:$0xff]
    %v957 = vld [vmem:[#allocation2 + $0x18] sm:$0xff]
    %v958 = vld [vmem:[#allocation9] sm:$0xff]
    %v959 = vld [vmem:[#allocation9 + $0x8] sm:$0xff]
    %v960 = vld [vmem:[#allocation9 + $0x10] sm:$0xff]
    %v961 = vld [vmem:[#allocation9 + $0x18] sm:$0xff]
    %v962 = vld [vmem:[#allocation9 + $0x20] sm:$0xff]
    %v963 = vld [vmem:[#allocation9 + $0x28] sm:$0xff]
    %v964 = vld [vmem:[#allocation9 + $0x30] sm:$0xff]
    %v965 = vld [vmem:[#allocation9 + $0x38] sm:$0xff]
    %v966 = vld [vmem:[#allocation9 + $0x40] sm:$0xff]
    %v967 = vld [vmem:[#allocation9 + $0x48] sm:$0xff]
    %v968 = vld [vmem:[#allocation9 + $0x50] sm:$0xff]
    %v969 = vld [vmem:[#allocation9 + $0x58] sm:$0xff]
    %v970 = vld [vmem:[#allocation9 + $0x60] sm:$0xff]
    %v971 = vld [vmem:[#allocation9 + $0x68] sm:$0xff]
    %v972 = vld [vmem:[#allocation9 + $0x70] sm:$0xff]
    %v973 = vld [vmem:[#allocation9 + $0x78] sm:$0xff]
    %v974 = vld [vmem:[#allocation9 + $0x80] sm:$0xff]
    %v975 = vld [vmem:[#allocation9 + $0x88] sm:$0xff]
    %v976 = vld [vmem:[#allocation9 + $0x90] sm:$0xff]
    %v977 = vld [vmem:[#allocation9 + $0x98] sm:$0xff]
    %v978 = vld [vmem:[#allocation9 + $0xa0] sm:$0xff]
    %v979 = vld [vmem:[#allocation9 + $0xa8] sm:$0xff]
    %v980 = vld [vmem:[#allocation9 + $0xb0] sm:$0xff]
    %v981 = vld [vmem:[#allocation9 + $0xb8] sm:$0xff]
    %v982 = vld [vmem:[#allocation9 + $0xc0] sm:$0xff]
    %v983 = vld [vmem:[#allocation9 + $0xc8] sm:$0xff]
    %v984 = vld [vmem:[#allocation9 + $0xd0] sm:$0xff]
    %v985 = vld [vmem:[#allocation9 + $0xd8] sm:$0xff]
    %v986 = vld [vmem:[#allocation9 + $0xe0] sm:$0xff]
    %v987 = vld [vmem:[#allocation9 + $0xe8] sm:$0xff]
    %v988 = vld [vmem:[#allocation9 + $0xf0] sm:$0xff]
    %v989 = vld [vmem:[#allocation9 + $0xf8] sm:$0xff]
    %v990 = vld [vmem:[#allocation9 + $0x100] sm:$0xff]
    %v991 = vld [vmem:[#allocation9 + $0x108] sm:$0xff]
    %v992 = vld [vmem:[#allocation9 + $0x110] sm:$0xff]
    %v993 = vld [vmem:[#allocation9 + $0x118] sm:$0xff]
    %v994 = vld [vmem:[#allocation9 + $0x120] sm:$0xff]
    %v995 = vld [vmem:[#allocation9 + $0x128] sm:$0xff]
    %v996 = vld [vmem:[#allocation9 + $0x130] sm:$0xff]
    %v997 = vld [vmem:[#allocation9 + $0x138] sm:$0xff]
    %v998 = vld [vmem:[#allocation9 + $0x140] sm:$0xff]
    %v999 = vld [vmem:[#allocation9 + $0x148] sm:$0xff]
    %v1000 = vld [vmem:[#allocation9 + $0x150] sm:$0xff]
    %v1001 = vld [vmem:[#allocation9 + $0x158] sm:$0xff]
    %v1002 = vld [vmem:[#allocation9 + $0x160] sm:$0xff]
    %v1003 = vld [vmem:[#allocation9 + $0x168] sm:$0xff]
    %v1004 = vld [vmem:[#allocation9 + $0x170] sm:$0xff]
    %v1005 = vld [vmem:[#allocation9 + $0x178] sm:$0xff]
    %v1006 = vld [vmem:[#allocation9 + $0x180] sm:$0xff]
    %v1007 = vld [vmem:[#allocation9 + $0x188] sm:$0xff]
    %v1008 = vld [vmem:[#allocation9 + $0x190] sm:$0xff]
    %v1009 = vld [vmem:[#allocation9 + $0x198] sm:$0xff]
    %v1010 = vld [vmem:[#allocation9 + $0x1a0] sm:$0xff]
    %v1011 = vld [vmem:[#allocation9 + $0x1a8] sm:$0xff]
    %v1012 = vld [vmem:[#allocation9 + $0x1b0] sm:$0xff]
    %v1013 = vld [vmem:[#allocation9 + $0x1b8] sm:$0xff]
    %v1014 = vld [vmem:[#allocation9 + $0x1c0] sm:$0xff]
    %v1015 = vld [vmem:[#allocation9 + $0x1c8] sm:$0xff]
    %v1016 = vld [vmem:[#allocation9 + $0x1d0] sm:$0xff]
    %v1017 = vld [vmem:[#allocation9 + $0x1d8] sm:$0xff]
    %v1018 = vld [vmem:[#allocation9 + $0x1e0] sm:$0xff]
    %v1019 = vld [vmem:[#allocation9 + $0x1e8] sm:$0xff]
    %v1020 = vld [vmem:[#allocation9 + $0x1f0] sm:$0xff]
    %v1021 = vld [vmem:[#allocation9 + $0x1f8] sm:$0xff]
    %v1022 = vld [vmem:[#allocation9 + $0x200] sm:$0xff]
    %v1023 = vld [vmem:[#allocation9 + $0x208] sm:$0xff]
    %v1024 = vld [vmem:[#allocation9 + $0x210] sm:$0xff]
    %v1025 = vld [vmem:[#allocation9 + $0x218] sm:$0xff]
    %v1026 = vld [vmem:[#allocation9 + $0x220] sm:$0xff]
    %v1027 = vld [vmem:[#allocation9 + $0x228] sm:$0xff]
    %v1028 = vld [vmem:[#allocation9 + $0x230] sm:$0xff]
    %v1029 = vld [vmem:[#allocation9 + $0x238] sm:$0xff]
    %v1030 = vld [vmem:[#allocation9 + $0x240] sm:$0xff]
    %v1031 = vld [vmem:[#allocation9 + $0x248] sm:$0xff]
    %v1032 = vld [vmem:[#allocation9 + $0x250] sm:$0xff]
    %v1033 = vld [vmem:[#allocation9 + $0x258] sm:$0xff]
    %v1034 = vld [vmem:[#allocation9 + $0x260] sm:$0xff]
    %v1035 = vld [vmem:[#allocation9 + $0x268] sm:$0xff]
    %v1036 = vld [vmem:[#allocation9 + $0x270] sm:$0xff]
    %v1037 = vld [vmem:[#allocation9 + $0x278] sm:$0xff]
    %v1038 = vld [vmem:[#allocation9 + $0x280] sm:$0xff]
    %v1039 = vld [vmem:[#allocation9 + $0x288] sm:$0xff]
    %v1040 = vld [vmem:[#allocation9 + $0x290] sm:$0xff]
    %v1041 = vld [vmem:[#allocation9 + $0x298] sm:$0xff]
    %v1042 = vld [vmem:[#allocation9 + $0x2a0] sm:$0xff]
    %v1043 = vld [vmem:[#allocation9 + $0x2a8] sm:$0xff]
    %v1044 = vld [vmem:[#allocation9 + $0x2b0] sm:$0xff]
    %v1045 = vld [vmem:[#allocation9 + $0x2b8] sm:$0xff]
    %v1046 = vld [vmem:[#allocation9 + $0x2c0] sm:$0xff]
    %v1047 = vld [vmem:[#allocation9 + $0x2c8] sm:$0xff]
    %v1048 = vld [vmem:[#allocation9 + $0x2d0] sm:$0xff]
    %v1049 = vld [vmem:[#allocation9 + $0x2d8] sm:$0xff]
    %v1050 = vld [vmem:[#allocation9 + $0x2e0] sm:$0xff]
    %v1051 = vld [vmem:[#allocation9 + $0x2e8] sm:$0xff]
    %v1052 = vld [vmem:[#allocation9 + $0x2f0] sm:$0xff]
    %v1053 = vld [vmem:[#allocation9 + $0x2f8] sm:$0xff]
    %v1054 = vld [vmem:[#allocation9 + $0x300] sm:$0xff]
    %v1055 = vld [vmem:[#allocation9 + $0x308] sm:$0xff]
    %v1056 = vld [vmem:[#allocation9 + $0x310] sm:$0xff]
    %v1057 = vld [vmem:[#allocation9 + $0x318] sm:$0xff]
    %v1058 = vld [vmem:[#allocation9 + $0x320] sm:$0xff]
    %v1059 = vld [vmem:[#allocation9 + $0x328] sm:$0xff]
    %v1060 = vld [vmem:[#allocation9 + $0x330] sm:$0xff]
    %v1061 = vld [vmem:[#allocation9 + $0x338] sm:$0xff]
    %v1062 = vld [vmem:[#allocation9 + $0x340] sm:$0xff]
    %v1063 = vld [vmem:[#allocation9 + $0x348] sm:$0xff]
    %v1064 = vld [vmem:[#allocation9 + $0x350] sm:$0xff]
    %v1065 = vld [vmem:[#allocation9 + $0x358] sm:$0xff]
    %v1066 = vld [vmem:[#allocation9 + $0x360] sm:$0xff]
    %v1067 = vld [vmem:[#allocation9 + $0x368] sm:$0xff]
    %v1068 = vld [vmem:[#allocation9 + $0x370] sm:$0xff]
    %v1069 = vld [vmem:[#allocation9 + $0x378] sm:$0xff]
    %v1070 = vld [vmem:[#allocation9 + $0x380] sm:$0xff]
    %v1071 = vld [vmem:[#allocation9 + $0x388] sm:$0xff]
    %v1072 = vld [vmem:[#allocation9 + $0x390] sm:$0xff]
    %v1073 = vld [vmem:[#allocation9 + $0x398] sm:$0xff]
    %v1074 = vld [vmem:[#allocation9 + $0x3a0] sm:$0xff]
    %v1075 = vld [vmem:[#allocation9 + $0x3a8] sm:$0xff]
    %v1076 = vld [vmem:[#allocation9 + $0x3b0] sm:$0xff]
    %v1077 = vld [vmem:[#allocation9 + $0x3b8] sm:$0xff]
    %v1078 = vld [vmem:[#allocation9 + $0x3c0] sm:$0xff]
    %v1079 = vld [vmem:[#allocation9 + $0x3c8] sm:$0xff]
    %v1080 = vld [vmem:[#allocation9 + $0x3d0] sm:$0xff]
    %v1081 = vld [vmem:[#allocation9 + $0x3d8] sm:$0xff]
    %v1082 = vld [vmem:[#allocation9 + $0x3e0] sm:$0xff]
    %v1083 = vld [vmem:[#allocation9 + $0x3e8] sm:$0xff]
    %v1084 = vld [vmem:[#allocation9 + $0x3f0] sm:$0xff]
    %v1085 = vld [vmem:[#allocation9 + $0x3f8] sm:$0xff]
    %1086 = vmatpush.msra.mxu0 %v988
    %1087 = vmatpush.msra.mxu0 %v986
    %1088 = vmatpush.msra.mxu0 %v984
    %1089 = vmatpush.msra.mxu0 %v982
    %1090 = vmatpush.msra.mxu0 %v980
    %1091 = vmatpush.msra.mxu0 %v978
    %1092 = vmatpush.msra.mxu0 %v976
    %1093 = vmatpush.msra.mxu0 %v974
    %1094 = vmatpush.msra.mxu0 %v972
    %1095 = vmatpush.msra.mxu0 %v970
    %1096 = vmatpush.msra.mxu0 %v968
    %1097 = vmatpush.msra.mxu0 %v966
    %1098 = vmatpush.msra.mxu0 %v964
    %1099 = vmatpush.msra.mxu0 %v962
    %1100 = vmatpush.msra.mxu0 %v960
    %1101 = vmatpush.msra.mxu0 %v958
    %1102 = vmatmul.f32.gmra.mxu0 %v946
    %v1103 = vpop.f32.mrf.mxu0
    %v1104 = vadd.f32 0.0, %v1103
    %1105 = vmatmul.f32.gmra.mxu0 %v950
    %v1106 = vpop.f32.mrf.mxu0
    %v1107 = vadd.f32 0.0, %v1106
    %1108 = vdwg.mxu0
    %1109 = vmatpush.msra.mxu0 %v1020
    %1110 = vmatpush.msra.mxu0 %v1018
    %1111 = vmatpush.msra.mxu0 %v1016
    %1112 = vmatpush.msra.mxu0 %v1014
    %1113 = vmatpush.msra.mxu0 %v1012
    %1114 = vmatpush.msra.mxu0 %v1010
    %1115 = vmatpush.msra.mxu0 %v1008
    %1116 = vmatpush.msra.mxu0 %v1006
    %1117 = vmatpush.msra.mxu0 %v1004
    %1118 = vmatpush.msra.mxu0 %v1002
    %1119 = vmatpush.msra.mxu0 %v1000
    %1120 = vmatpush.msra.mxu0 %v998
    %1121 = vmatpush.msra.mxu0 %v996
    %1122 = vmatpush.msra.mxu0 %v994
    %1123 = vmatpush.msra.mxu0 %v992
    %1124 = vmatpush.msra.mxu0 %v990
    %1125 = vmatmul.f32.gmra.mxu0 %v947
    %v1126 = vpop.f32.mrf.mxu0
    %v1127 = vadd.f32 %v1104, %v1126
    %1128 = vmatmul.f32.gmra.mxu0 %v951
    %v1129 = vpop.f32.mrf.mxu0
    %v1130 = vadd.f32 %v1107, %v1129
    %1131 = vdwg.mxu0
    %1132 = vmatpush.msra.mxu0 %v1052
    %1133 = vmatpush.msra.mxu0 %v1050
    %1134 = vmatpush.msra.mxu0 %v1048
    %1135 = vmatpush.msra.mxu0 %v1046
    %1136 = vmatpush.msra.mxu0 %v1044
    %1137 = vmatpush.msra.mxu0 %v1042
    %1138 = vmatpush.msra.mxu0 %v1040
    %1139 = vmatpush.msra.mxu0 %v1038
    %1140 = vmatpush.msra.mxu0 %v1036
    %1141 = vmatpush.msra.mxu0 %v1034
    %1142 = vmatpush.msra.mxu0 %v1032
    %1143 = vmatpush.msra.mxu0 %v1030
    %1144 = vmatpush.msra.mxu0 %v1028
    %1145 = vmatpush.msra.mxu0 %v1026
    %1146 = vmatpush.msra.mxu0 %v1024
    %1147 = vmatpush.msra.mxu0 %v1022
    %1148 = vmatmul.f32.gmra.mxu0 %v948
    %v1149 = vpop.f32.mrf.mxu0
    %v1150 = vadd.f32 %v1127, %v1149
    %1151 = vmatmul.f32.gmra.mxu0 %v952
    %v1152 = vpop.f32.mrf.mxu0
    %v1153 = vadd.f32 %v1130, %v1152
    %1154 = vdwg.mxu0
    %1155 = vmatpush.msra.mxu0 %v1084
    %1156 = vmatpush.msra.mxu0 %v1082
    %1157 = vmatpush.msra.mxu0 %v1080
    %1158 = vmatpush.msra.mxu0 %v1078
    %1159 = vmatpush.msra.mxu0 %v1076
    %1160 = vmatpush.msra.mxu0 %v1074
    %1161 = vmatpush.msra.mxu0 %v1072
    %1162 = vmatpush.msra.mxu0 %v1070
    %1163 = vmatpush.msra.mxu0 %v1068
    %1164 = vmatpush.msra.mxu0 %v1066
    %1165 = vmatpush.msra.mxu0 %v1064
    %1166 = vmatpush.msra.mxu0 %v1062
    %1167 = vmatpush.msra.mxu0 %v1060
    %1168 = vmatpush.msra.mxu0 %v1058
    %1169 = vmatpush.msra.mxu0 %v1056
    %1170 = vmatpush.msra.mxu0 %v1054
    %1171 = vmatmul.f32.gmra.mxu0 %v949
    %v1172 = vpop.f32.mrf.mxu0
    %v1173 = vadd.f32 %v1150, %v1172
    %1174 = vmatmul.f32.gmra.mxu0 %v953
    %v1175 = vpop.f32.mrf.mxu0
    %v1176 = vadd.f32 %v1153, %v1175
    %1177 = vdwg.mxu0
    %1178 = vmatpush.msra.mxu0 %v989
    %1179 = vmatpush.msra.mxu0 %v987
    %1180 = vmatpush.msra.mxu0 %v985
    %1181 = vmatpush.msra.mxu0 %v983
    %1182 = vmatpush.msra.mxu0 %v981
    %1183 = vmatpush.msra.mxu0 %v979
    %1184 = vmatpush.msra.mxu0 %v977
    %1185 = vmatpush.msra.mxu0 %v975
    %1186 = vmatpush.msra.mxu0 %v973
    %1187 = vmatpush.msra.mxu0 %v971
    %1188 = vmatpush.msra.mxu0 %v969
    %1189 = vmatpush.msra.mxu0 %v967
    %1190 = vmatpush.msra.mxu0 %v965
    %1191 = vmatpush.msra.mxu0 %v963
    %1192 = vmatpush.msra.mxu0 %v961
    %1193 = vmatpush.msra.mxu0 %v959
    %1194 = vmatmul.f32.gmra.mxu0 %v946
    %v1195 = vpop.f32.mrf.mxu0
    %v1196 = vadd.f32 0.0, %v1195
    %1197 = vmatmul.f32.gmra.mxu0 %v950
    %v1198 = vpop.f32.mrf.mxu0
    %v1199 = vadd.f32 0.0, %v1198
    %1200 = vdwg.mxu0
    %1201 = vmatpush.msra.mxu0 %v1021
    %1202 = vmatpush.msra.mxu0 %v1019
    %1203 = vmatpush.msra.mxu0 %v1017
    %1204 = vmatpush.msra.mxu0 %v1015
    %1205 = vmatpush.msra.mxu0 %v1013
    %1206 = vmatpush.msra.mxu0 %v1011
    %1207 = vmatpush.msra.mxu0 %v1009
    %1208 = vmatpush.msra.mxu0 %v1007
    %1209 = vmatpush.msra.mxu0 %v1005
    %1210 = vmatpush.msra.mxu0 %v1003
    %1211 = vmatpush.msra.mxu0 %v1001
    %1212 = vmatpush.msra.mxu0 %v999
    %1213 = vmatpush.msra.mxu0 %v997
    %1214 = vmatpush.msra.mxu0 %v995
    %1215 = vmatpush.msra.mxu0 %v993
    %1216 = vmatpush.msra.mxu0 %v991
    %1217 = vmatmul.f32.gmra.mxu0 %v947
    %v1218 = vpop.f32.mrf.mxu0
    %v1219 = vadd.f32 %v1196, %v1218
    %1220 = vmatmul.f32.gmra.mxu0 %v951
    %v1221 = vpop.f32.mrf.mxu0
    %v1222 = vadd.f32 %v1199, %v1221
    %1223 = vdwg.mxu0
    %1224 = vmatpush.msra.mxu0 %v1053
    %1225 = vmatpush.msra.mxu0 %v1051
    %1226 = vmatpush.msra.mxu0 %v1049
    %1227 = vmatpush.msra.mxu0 %v1047
    %1228 = vmatpush.msra.mxu0 %v1045
    %1229 = vmatpush.msra.mxu0 %v1043
    %1230 = vmatpush.msra.mxu0 %v1041
    %1231 = vmatpush.msra.mxu0 %v1039
    %1232 = vmatpush.msra.mxu0 %v1037
    %1233 = vmatpush.msra.mxu0 %v1035
    %1234 = vmatpush.msra.mxu0 %v1033
    %1235 = vmatpush.msra.mxu0 %v1031
    %1236 = vmatpush.msra.mxu0 %v1029
    %1237 = vmatpush.msra.mxu0 %v1027
    %1238 = vmatpush.msra.mxu0 %v1025
    %1239 = vmatpush.msra.mxu0 %v1023
    %1240 = vmatmul.f32.gmra.mxu0 %v948
    %v1241 = vpop.f32.mrf.mxu0
    %v1242 = vadd.f32 %v1219, %v1241
    %1243 = vmatmul.f32.gmra.mxu0 %v952
    %v1244 = vpop.f32.mrf.mxu0
    %v1245 = vadd.f32 %v1222, %v1244
    %1246 = vdwg.mxu0
    %1247 = vmatpush.msra.mxu0 %v1085
    %1248 = vmatpush.msra.mxu0 %v1083
    %1249 = vmatpush.msra.mxu0 %v1081
    %1250 = vmatpush.msra.mxu0 %v1079
    %1251 = vmatpush.msra.mxu0 %v1077
    %1252 = vmatpush.msra.mxu0 %v1075
    %1253 = vmatpush.msra.mxu0 %v1073
    %1254 = vmatpush.msra.mxu0 %v1071
    %1255 = vmatpush.msra.mxu0 %v1069
    %1256 = vmatpush.msra.mxu0 %v1067
    %1257 = vmatpush.msra.mxu0 %v1065
    %1258 = vmatpush.msra.mxu0 %v1063
    %1259 = vmatpush.msra.mxu0 %v1061
    %1260 = vmatpush.msra.mxu0 %v1059
    %1261 = vmatpush.msra.mxu0 %v1057
    %1262 = vmatpush.msra.mxu0 %v1055
    %1263 = vmatmul.f32.gmra.mxu0 %v949
    %v1264 = vpop.f32.mrf.mxu0
    %v1265 = vadd.f32 %v1242, %v1264
    %1266 = vmatmul.f32.gmra.mxu0 %v953
    %v1267 = vpop.f32.mrf.mxu0
    %v1268 = vadd.f32 %v1245, %v1267
    %1269 = vdwg.mxu0
    %v1270 = vadd.f32 %v954, %v1173
    %v1271 = vadd.f32 %v955, %v1265
    %v1272 = vadd.f32 %v956, %v1176
    %v1273 = vadd.f32 %v957, %v1268
    %1274 = vst [vmem:[#allocation2] sm:$0xff] %v1270
    %1275 = vst [vmem:[#allocation2 + $0x8] sm:$0xff] %v1271
    %1276 = vst [vmem:[#allocation2 + $0x10] sm:$0xff] %v1272
    %1277 = vst [vmem:[#allocation2 + $0x18] sm:$0xff] %v1273
    // Predicated region
    $region62: #{mlp_forward.1} parent=1 // pred_check
      %p1278 = pneg %p130
    $region63: #{mlp_forward.1} parent=1 // pred_check_branch
      %1280 = sbr.rel (%p1278) target = $region65
    $region64: #{mlp_forward.1} parent=1 // pred_region
      %v1281 = vld [vmem:[#allocation2] sm:$0xff]
      %v1282 = vld [vmem:[#allocation2 + $0x8] sm:$0xff]
      %v1283 = vld [vmem:[#allocation2 + $0x10] sm:$0xff]
      %v1284 = vld [vmem:[#allocation2 + $0x18] sm:$0xff]
      %v1285 = vld [vmem:[#allocation14] sm:$0x3]
      %v1287 = vperm.slane %v1285, 0
      %v1288 = vperm.slane %v1285, 1
      %v1291 = vadd.f32 %v1281, %v1287
      %v1292 = vadd.f32 %v1282, %v1288
      %v1293 = vadd.f32 %v1283, %v1287
      %v1294 = vadd.f32 %v1284, %v1288
      %1295 = vst [vmem:[#allocation15] sm:$0xff] %v1291
      %1296 = vst [vmem:[#allocation15 + $0x8] sm:$0xff] %v1292
      %1297 = vst [vmem:[#allocation15 + $0x10] sm:$0xff] %v1293
      %1298 = vst [vmem:[#allocation15 + $0x18] sm:$0xff] %v1294
    $region65: #{mlp_forward.1} parent=1 // pred_fallthru
      _
    // Predicated region
    $region66: #{mlp_forward.1} parent=1 // pred_check
      _
    $region67: #{mlp_forward.1} parent=1 // pred_check_branch
      %1300 = sbr.rel (0) target = $region69
    $region68: #{mlp_forward.1} parent=1 // pred_region
      %1302 = vsyncadd [#allocation5], 0
      %s1303 = sshll.u32 [#allocation15], 4
      %s1304 = int_to_ptr.vmem [resolvable:$true] %s1303
      %s1305 = sshll.u32 %s7, 4
      %s1306 = int_to_ptr.hbm [resolvable:$true] %s1305
      %1311 = dma.vmem_to_hbm [thread:$0]  %s1304, 512, %s1306, [#allocation5], 256, 256, 16
    $region69: #{mlp_forward.1} parent=1 // pred_fallthru
      _
    // Predicated region
    $region70: #{mlp_forward.1} parent=1 // pred_check
      _
    $region71: #{mlp_forward.1} parent=1 // pred_check_branch
      %1313 = sbr.rel (0) target = $region73
    $region72: #{mlp_forward.1} parent=1 // pred_region
      %1315 = dma.done [#allocation5], 512
    $region73: #{mlp_forward.1} parent=1 // pred_fallthru
      _
    %1316 = vsyncpa [#allocation4], 1
    %1317 = vsyncpa [#allocation7], 1
    %1318 = vsyncpa [#allocation10], 1
    %1319 = vsyncpa [#allocation13], 1
    %1320 = vsyncpa [#allocation5], 1

</llo_original>
